<compile_context>
chip_gen: v7x
topology: tpu7x:2x2x1
jax: 0.10.0
libtpu: 0.0.40
codegen_flags: <defaults>
</compile_context>

<pallas_src>
import functools
import math

import jax
import jax.numpy as jnp
from jax.experimental import pallas as pl
from jax.experimental.pallas import tpu as pltpu


# ----------------------------- kernel helpers -------------------------------

def _layernorm(x, g, b, eps=1e-5):
    # PyTorch nn.LayerNorm: biased variance over last dim, eps inside sqrt.
    mu = jnp.mean(x, axis=-1, keepdims=True)
    var = jnp.mean((x - mu) ** 2, axis=-1, keepdims=True)
    return (x - mu) * jax.lax.rsqrt(var + eps) * g + b


def _gelu_exact(x):
    # PyTorch nn.GELU() default: exact erf formulation.
    return 0.5 * x * (1.0 + jax.lax.erf(x * jnp.float32(1.0 / math.sqrt(2.0))))


# ------------------------------ fused kernel ---------------------------------

def fused_transformer_kernel(x_hbm_ref,
                             g1_ref, b1_ref,
                             wq_ref, bq_ref, wk_ref, bk_ref, wv_ref, bv_ref,
                             wo_ref, bo_ref,
                             g2_ref, b2_ref,
                             w1_ref, bf1_ref, w2_ref, bf2_ref,
                             gF_ref, bF_ref,
                             o_ref, xs_ref, ctx_ref,
                             *, num_heads, batch, seq):
    """One grid step == one transformer layer; residual stream in xs_ref."""
    l = pl.program_id(0)
    D = xs_ref.shape[-1]
    rows = batch * seq
    hd = D // num_heads
    scale = jnp.float32(1.0 / math.sqrt(hd))

    # Load the input activations into the resident VMEM scratch on layer 0.
    # x stays in HBM (memory_space=pl.ANY) — one DMA, no double-buffered copy.
    @pl.when(l == 0)
    def _():
        pltpu.sync_copy(x_hbm_ref, xs_ref)

    x = xs_ref[...].reshape(rows, D)                  # (B*S, D) f32 residual

    # ---- attention sublayer: x = x + Attn(LN1(x)) ----
    xn = _layernorm(x, g1_ref[0], b1_ref[0])
    xn_b = xn.astype(jnp.bfloat16)                    # bf16 MXU operand
    q = jnp.dot(xn_b, wq_ref[0], preferred_element_type=jnp.float32) + bq_ref[0]
    k = jnp.dot(xn_b, wk_ref[0], preferred_element_type=jnp.float32) + bk_ref[0]
    v = jnp.dot(xn_b, wv_ref[0], preferred_element_type=jnp.float32) + bv_ref[0]

    # Fold the 1/sqrt(hd) softmax scale into q (one (B*S, D) multiply) instead
    # of scaling every (B, S, S) score tensor per head.
    q = q * scale

    q3 = q.astype(jnp.bfloat16).reshape(batch, seq, D)
    k3 = k.astype(jnp.bfloat16).reshape(batch, seq, D)
    v3 = v.astype(jnp.bfloat16).reshape(batch, seq, D)

    # Per-head softmax-attention; each head's context is stored into a
    # lane-aligned bf16 scratch at lane offset h*hd (no concatenate, no
    # per-head accumulator), then a single full-K matmul applies Wo.
    # TODO(synk): tile flash-style over S for production sequence lengths.
    for h in range(num_heads):                        # static, small
        sl = slice(h * hd, (h + 1) * hd)
        s = jnp.einsum('bqd,bkd->bqk', q3[:, :, sl], k3[:, :, sl],
                       preferred_element_type=jnp.float32)
        s = s - jnp.max(s, axis=-1, keepdims=True)
        p = jnp.exp(s)
        p = p * pl.reciprocal(jnp.sum(p, axis=-1, keepdims=True), approx=True)
        ctx = jnp.einsum('bqk,bkd->bqd', p.astype(jnp.bfloat16), v3[:, :, sl],
                         preferred_element_type=jnp.float32)      # (B,S,hd)
        ctx_ref[:, :, sl] = ctx.astype(jnp.bfloat16)

    attn = jnp.dot(ctx_ref[...].reshape(rows, D), wo_ref[0],
                   preferred_element_type=jnp.float32)            # full-K Wo
    x = x + attn + bo_ref[0]

    # ---- FFN sublayer: x = x + W2(GELU(W1(LN2(x)))) ----
    # TODO(synk): chunk the 4D hidden dim for production D (v7x VMEM fit).
    xn2 = _layernorm(x, g2_ref[0], b2_ref[0])
    hmid = jnp.dot(xn2.astype(jnp.bfloat16), w1_ref[0],
                   preferred_element_type=jnp.float32) + bf1_ref[0]
    hmid = _gelu_exact(hmid)
    y = jnp.dot(hmid.astype(jnp.bfloat16), w2_ref[0],
                preferred_element_type=jnp.float32) + bf2_ref[0]
    x = x + y

    xs_ref[...] = x.reshape(batch, seq, D)            # carry to next layer

    # ---- final LayerNorm fused into the last layer's epilogue ----
    @pl.when(l == pl.num_programs(0) - 1)
    def _():
        xf = _layernorm(x, gF_ref[...], bF_ref[...])
        o_ref[...] = xf.reshape(batch, seq, D).astype(o_ref.dtype)


# ------------------------------- wrapper --------------------------------------

_WEIGHT_ORDER = ["ln1_g", "ln1_b",
                 "wq", "bq", "wk", "bk", "wv", "bv", "wo", "bo",
                 "ln2_g", "ln2_b",
                 "w1", "bf1", "w2", "bf2"]


def _vmem_limit_bytes():
    # Per-generation VMEM limit: ~112 MiB on v5e/v6e (128 MiB physical),
    # ~56 MiB on v7x (64 MiB physical); leave 1/8 headroom for the compiler.
    cap = 64 * 1024 * 1024
    try:
        info = pltpu.get_tpu_info()
        cap = int(getattr(info, "vmem_capacity_bytes", cap))
    except Exception:
        pass
    return max(cap - cap // 8, 32 * 1024 * 1024)


def fractal_transformer_forward(x, params, num_heads):
    B, S, D = x.shape
    L = params["wq"].shape[0]
    assert D % num_heads == 0, "dim must be divisible by num_heads"

    kernel = functools.partial(fused_transformer_kernel,
                               num_heads=num_heads, batch=B, seq=S)

    weights = [params[name] for name in _WEIGHT_ORDER]

    def stacked_spec(p):
        # One layer slice per grid step; trailing dims are full (no 8x128 issue).
        return pl.BlockSpec((1,) + p.shape[1:],
                            lambda l: (l,) + (0,) * (p.ndim - 1))

    in_specs = [pl.BlockSpec(memory_space=pl.ANY)]                 # x (raw HBM)
    in_specs += [stacked_spec(p) for p in weights]                 # per-layer
    in_specs += [pl.BlockSpec(params["final_g"].shape, lambda l: (0, 0)),
                 pl.BlockSpec(params["final_b"].shape, lambda l: (0, 0))]

    return pl.pallas_call(
        kernel,
        out_shape=jax.ShapeDtypeStruct((B, S, D), x.dtype),
        grid=(L,),
        in_specs=in_specs,
        out_specs=pl.BlockSpec((B, S, D), lambda l: (0, 0, 0)),
        scratch_shapes=[pltpu.VMEM((B, S, D), jnp.float32),    # resident residual
                        pltpu.VMEM((B, S, D), jnp.bfloat16)],  # per-head contexts
        compiler_params=pltpu.CompilerParams(
            dimension_semantics=("arbitrary",),   # sequential layer loop
            vmem_limit_bytes=_vmem_limit_bytes()),
    )(x, *weights, params["final_g"], params["final_b"])


# --------------------------- deterministic params ----------------------------

def init_params(key, dim, num_heads, num_layers):
    def dense(k, fan_in, fan_out):
        # Matmul weights are stacked host-side in bf16 (native MXU dtype).
        w = jax.random.normal(k, (fan_in, fan_out), jnp.float32) * 0.02
        return w.astype(jnp.bfloat16)

    per_layer = {name: [] for name in _WEIGHT_ORDER}
    for li in range(num_layers):
        k = jax.random.fold_in(key, li)
        ks = jax.random.split(k, 6)
        layer = {
            "ln1_g": jnp.ones((1, dim), jnp.float32),
            "ln1_b": jnp.zeros((1, dim), jnp.float32),
            "wq": dense(ks[0], dim, dim), "bq": jnp.zeros((1, dim), jnp.float32),
            "wk": dense(ks[1], dim, dim), "bk": jnp.zeros((1, dim), jnp.float32),
            "wv": dense(ks[2], dim, dim), "bv": jnp.zeros((1, dim), jnp.float32),
            "wo": dense(ks[3], dim, dim), "bo": jnp.zeros((1, dim), jnp.float32),
            "ln2_g": jnp.ones((1, dim), jnp.float32),
            "ln2_b": jnp.zeros((1, dim), jnp.float32),
            "w1": dense(ks[4], dim, 4 * dim),
            "bf1": jnp.zeros((1, 4 * dim), jnp.float32),
            "w2": dense(ks[5], 4 * dim, dim),
            "bf2": jnp.zeros((1, dim), jnp.float32),
        }
        for name in _WEIGHT_ORDER:
            per_layer[name].append(layer[name])

    params = {name: jnp.stack(per_layer[name], axis=0) for name in _WEIGHT_ORDER}
    params["final_g"] = jnp.ones((1, dim), jnp.float32)
    params["final_b"] = jnp.zeros((1, dim), jnp.float32)
    return params


# ----------------------------- pure-JAX reference -----------------------------

def reference_forward(x, params, num_heads):
    B, S, D = x.shape
    hd = D // num_heads
    L = params["wq"].shape[0]
    f32 = lambda a: a.astype(jnp.float32)     # upcast bf16-stacked weights

    def ln(x, g, b, eps=1e-5):
        mu = jnp.mean(x, -1, keepdims=True)
        var = jnp.mean((x - mu) ** 2, -1, keepdims=True)
        return (x - mu) / jnp.sqrt(var + eps) * g + b

    for l in range(L):
        xn = ln(x, params["ln1_g"][l], params["ln1_b"][l])
        q = xn @ f32(params["wq"][l]) + params["bq"][l]
        k = xn @ f32(params["wk"][l]) + params["bk"][l]
        v = xn @ f32(params["wv"][l]) + params["bv"][l]
        q = q.reshape(B, S, num_heads, hd).transpose(0, 2, 1, 3)
        k = k.reshape(B, S, num_heads, hd).transpose(0, 2, 1, 3)
        v = v.reshape(B, S, num_heads, hd).transpose(0, 2, 1, 3)
        s = jnp.einsum('bhqd,bhkd->bhqk', q, k) / math.sqrt(hd)
        p = jax.nn.softmax(s, axis=-1)
        ctx = jnp.einsum('bhqk,bhkd->bhqd', p, v)
        ctx = ctx.transpose(0, 2, 1, 3).reshape(B, S, D)
        x = x + ctx @ f32(params["wo"][l]) + params["bo"][l]
        xn2 = ln(x, params["ln2_g"][l], params["ln2_b"][l])
        h = jax.nn.gelu(xn2 @ f32(params["w1"][l]) + params["bf1"][l],
                        approximate=False)
        x = x + h @ f32(params["w2"][l]) + params["bf2"][l]
    return ln(x, params["final_g"], params["final_b"])


# ---------------------------------- main --------------------------------------

if __name__ == "__main__":
    B, S, D = 2, 8, 32
    NUM_HEADS = 4
    NUM_LAYERS = 2

    key = jax.random.PRNGKey(0)
    kx, kp = jax.random.split(key)
    x = jax.random.normal(kx, (B, S, D), jnp.float32)
    params = init_params(kp, D, NUM_HEADS, NUM_LAYERS)

    out = fractal_transformer_forward(x, params, NUM_HEADS)
    out = jax.block_until_ready(out)
    assert out.shape == (B, S, D)

    ref = jax.block_until_ready(reference_forward(x, params, NUM_HEADS))
    # Loose tolerance: bf16 MXU operands + approx reciprocal in the softmax.
    assert jnp.allclose(out, ref, atol=2e-2, rtol=2e-2), "mismatch vs reference"

    print("KERNEL_OK")
</pallas_src>

<mosaic_0001>
module attributes {stable_mosaic.version = 11 : i64} {
  func.func @fused_transformer_kernel(%arg0: i32, %arg1: memref<2x8x32xf32, #tpu.memory_space<any>>, %arg2: memref<1x1x32xf32, #tpu.memory_space<vmem>>, %arg3: memref<1x1x32xf32, #tpu.memory_space<vmem>>, %arg4: memref<1x32x32xbf16, #tpu.memory_space<vmem>>, %arg5: memref<1x1x32xf32, #tpu.memory_space<vmem>>, %arg6: memref<1x32x32xbf16, #tpu.memory_space<vmem>>, %arg7: memref<1x1x32xf32, #tpu.memory_space<vmem>>, %arg8: memref<1x32x32xbf16, #tpu.memory_space<vmem>>, %arg9: memref<1x1x32xf32, #tpu.memory_space<vmem>>, %arg10: memref<1x32x32xbf16, #tpu.memory_space<vmem>>, %arg11: memref<1x1x32xf32, #tpu.memory_space<vmem>>, %arg12: memref<1x1x32xf32, #tpu.memory_space<vmem>>, %arg13: memref<1x1x32xf32, #tpu.memory_space<vmem>>, %arg14: memref<1x32x128xbf16, #tpu.memory_space<vmem>>, %arg15: memref<1x1x128xf32, #tpu.memory_space<vmem>>, %arg16: memref<1x128x32xbf16, #tpu.memory_space<vmem>>, %arg17: memref<1x1x32xf32, #tpu.memory_space<vmem>>, %arg18: memref<1x32xf32, #tpu.memory_space<vmem>>, %arg19: memref<1x32xf32, #tpu.memory_space<vmem>>, %arg20: memref<2x8x32xf32, #tpu.memory_space<vmem>>, %arg21: memref<2x8x32xf32, #tpu.memory_space<vmem>>, %arg22: memref<2x8x32xbf16, #tpu.memory_space<vmem>>) attributes {dimension_semantics = [#tpu.dimension_semantics<arbitrary>], iteration_bounds = array<i64: 2>, scalar_prefetch = 0 : i64, scratch_operands = 2 : i64, tpu.core_type = #tpu.core_type<tc>, window_params = [{}, {transform_indices = @transform_1, window_bounds = array<i64: 1, 1, 32>}, {transform_indices = @transform_2, window_bounds = array<i64: 1, 1, 32>}, {transform_indices = @transform_3, window_bounds = array<i64: 1, 32, 32>}, {transform_indices = @transform_4, window_bounds = array<i64: 1, 1, 32>}, {transform_indices = @transform_5, window_bounds = array<i64: 1, 32, 32>}, {transform_indices = @transform_6, window_bounds = array<i64: 1, 1, 32>}, {transform_indices = @transform_7, window_bounds = array<i64: 1, 32, 32>}, {transform_indices = @transform_8, window_bounds = array<i64: 1, 1, 32>}, {transform_indices = @transform_9, window_bounds = array<i64: 1, 32, 32>}, {transform_indices = @transform_10, window_bounds = array<i64: 1, 1, 32>}, {transform_indices = @transform_11, window_bounds = array<i64: 1, 1, 32>}, {transform_indices = @transform_12, window_bounds = array<i64: 1, 1, 32>}, {transform_indices = @transform_13, window_bounds = array<i64: 1, 32, 128>}, {transform_indices = @transform_14, window_bounds = array<i64: 1, 1, 128>}, {transform_indices = @transform_15, window_bounds = array<i64: 1, 128, 32>}, {transform_indices = @transform_16, window_bounds = array<i64: 1, 1, 32>}, {pipeline_mode = #tpu.pipeline_mode<synchronous>, transform_indices = @transform_17, window_bounds = array<i64: 1, 32>}, {pipeline_mode = #tpu.pipeline_mode<synchronous>, transform_indices = @transform_18, window_bounds = array<i64: 1, 32>}, {pipeline_mode = #tpu.pipeline_mode<synchronous>, transform_indices = @transform_19, window_bounds = array<i64: 2, 8, 32>}]} {
    %c0_i32 = arith.constant 0 : i32
    %0 = arith.cmpi eq, %arg0, %c0_i32 : i32
    %1 = arith.extui %0 : i1 to i32
    %c0_i32_0 = arith.constant 0 : i32
    %2 = arith.cmpi ne, %1, %c0_i32_0 : i32
    scf.if %2 {
      "tpu.region"() ({
        %199 = tpu.sem_alloc : memref<!tpu.dma_semaphore, #tpu.memory_space<semaphore_mem>>
        tpu.enqueue_dma source(%arg1 : memref<2x8x32xf32, #tpu.memory_space<any>>) target(%arg21 : memref<2x8x32xf32, #tpu.memory_space<vmem>>) target_semaphore(%199 : memref<!tpu.dma_semaphore, #tpu.memory_space<semaphore_mem>>)
        tpu.wait_dma2 semaphore(%199 : memref<!tpu.dma_semaphore, #tpu.memory_space<semaphore_mem>>) src(%arg1 : memref<2x8x32xf32, #tpu.memory_space<any>>) dst(%arg21 : memref<2x8x32xf32, #tpu.memory_space<vmem>>)
        tpu.yield
      }) : () -> ()
    } else {
    }
    %c0 = arith.constant 0 : index
    %c0_1 = arith.constant 0 : index
    %c0_2 = arith.constant 0 : index
    %3 = vector.load %arg21[%c0, %c0_1, %c0_2] : memref<2x8x32xf32, #tpu.memory_space<vmem>>, vector<2x8x32xf32>
    %4 = vector.shape_cast %3 : vector<2x8x32xf32> to vector<16x32xf32>
    %c0_3 = arith.constant 0 : index
    %c0_4 = arith.constant 0 : index
    %c0_5 = arith.constant 0 : index
    %5 = vector.load %arg2[%c0_3, %c0_4, %c0_5] : memref<1x1x32xf32, #tpu.memory_space<vmem>>, vector<1x1x32xf32>
    %6 = vector.shape_cast %5 : vector<1x1x32xf32> to vector<1x32xf32>
    %c0_6 = arith.constant 0 : index
    %c0_7 = arith.constant 0 : index
    %c0_8 = arith.constant 0 : index
    %7 = vector.load %arg3[%c0_6, %c0_7, %c0_8] : memref<1x1x32xf32, #tpu.memory_space<vmem>>, vector<1x1x32xf32>
    %8 = vector.shape_cast %7 : vector<1x1x32xf32> to vector<1x32xf32>
    %cst = arith.constant dense<0.000000e+00> : vector<16xf32>
    %9 = vector.multi_reduction <add>, %4, %cst [1] : vector<16x32xf32> to vector<16xf32>
    %10 = vector.shape_cast %9 : vector<16xf32> to vector<16x1xf32>
    %cst_9 = arith.constant 3.200000e+01 : f32
    %11 = vector.broadcast %cst_9 : f32 to vector<16x1xf32>
    %12 = arith.divf %10, %11 : vector<16x1xf32>
    %13 = vector.broadcast %12 : vector<16x1xf32> to vector<16x32xf32>
    %14 = arith.subf %4, %13 : vector<16x32xf32>
    %15 = arith.mulf %14, %14 : vector<16x32xf32>
    %cst_10 = arith.constant dense<0.000000e+00> : vector<16xf32>
    %16 = vector.multi_reduction <add>, %15, %cst_10 [1] : vector<16x32xf32> to vector<16xf32>
    %17 = vector.shape_cast %16 : vector<16xf32> to vector<16x1xf32>
    %cst_11 = arith.constant 3.200000e+01 : f32
    %18 = vector.broadcast %cst_11 : f32 to vector<16x1xf32>
    %19 = arith.divf %17, %18 : vector<16x1xf32>
    %20 = vector.broadcast %12 : vector<16x1xf32> to vector<16x32xf32>
    %21 = arith.subf %4, %20 : vector<16x32xf32>
    %cst_12 = arith.constant 9.99999974E-6 : f32
    %22 = vector.broadcast %cst_12 : f32 to vector<16x1xf32>
    %23 = arith.addf %19, %22 : vector<16x1xf32>
    %24 = math.rsqrt %23 : vector<16x1xf32>
    %25 = vector.broadcast %24 : vector<16x1xf32> to vector<16x32xf32>
    %26 = arith.mulf %21, %25 : vector<16x32xf32>
    %27 = vector.broadcast %6 : vector<1x32xf32> to vector<16x32xf32>
    %28 = arith.mulf %26, %27 : vector<16x32xf32>
    %29 = vector.broadcast %8 : vector<1x32xf32> to vector<16x32xf32>
    %30 = arith.addf %28, %29 : vector<16x32xf32>
    %31 = arith.truncf %30 : vector<16x32xf32> to vector<16x32xbf16>
    %c0_13 = arith.constant 0 : index
    %c0_14 = arith.constant 0 : index
    %c0_15 = arith.constant 0 : index
    %32 = vector.load %arg4[%c0_13, %c0_14, %c0_15] : memref<1x32x32xbf16, #tpu.memory_space<vmem>>, vector<1x32x32xbf16>
    %33 = vector.shape_cast %32 : vector<1x32x32xbf16> to vector<32x32xbf16>
    %cst_16 = arith.constant dense<0.000000e+00> : vector<16x32xf32>
    %34 = tpu.matmul %31, %33, %cst_16 {dimension_numbers = #tpu.dot_dimension_numbers<[1], [0], [0], [1], [0, 0, 1, 1], [], []>} : vector<16x32xbf16>, vector<32x32xbf16>, vector<16x32xf32> -> vector<16x32xf32>
    %c0_17 = arith.constant 0 : index
    %c0_18 = arith.constant 0 : index
    %c0_19 = arith.constant 0 : index
    %35 = vector.load %arg5[%c0_17, %c0_18, %c0_19] : memref<1x1x32xf32, #tpu.memory_space<vmem>>, vector<1x1x32xf32>
    %36 = vector.shape_cast %35 : vector<1x1x32xf32> to vector<1x32xf32>
    %37 = vector.broadcast %36 : vector<1x32xf32> to vector<16x32xf32>
    %38 = arith.addf %34, %37 : vector<16x32xf32>
    %c0_20 = arith.constant 0 : index
    %c0_21 = arith.constant 0 : index
    %c0_22 = arith.constant 0 : index
    %39 = vector.load %arg6[%c0_20, %c0_21, %c0_22] : memref<1x32x32xbf16, #tpu.memory_space<vmem>>, vector<1x32x32xbf16>
    %40 = vector.shape_cast %39 : vector<1x32x32xbf16> to vector<32x32xbf16>
    %cst_23 = arith.constant dense<0.000000e+00> : vector<16x32xf32>
    %41 = tpu.matmul %31, %40, %cst_23 {dimension_numbers = #tpu.dot_dimension_numbers<[1], [0], [0], [1], [0, 0, 1, 1], [], []>} : vector<16x32xbf16>, vector<32x32xbf16>, vector<16x32xf32> -> vector<16x32xf32>
    %c0_24 = arith.constant 0 : index
    %c0_25 = arith.constant 0 : index
    %c0_26 = arith.constant 0 : index
    %42 = vector.load %arg7[%c0_24, %c0_25, %c0_26] : memref<1x1x32xf32, #tpu.memory_space<vmem>>, vector<1x1x32xf32>
    %43 = vector.shape_cast %42 : vector<1x1x32xf32> to vector<1x32xf32>
    %44 = vector.broadcast %43 : vector<1x32xf32> to vector<16x32xf32>
    %45 = arith.addf %41, %44 : vector<16x32xf32>
    %c0_27 = arith.constant 0 : index
    %c0_28 = arith.constant 0 : index
    %c0_29 = arith.constant 0 : index
    %46 = vector.load %arg8[%c0_27, %c0_28, %c0_29] : memref<1x32x32xbf16, #tpu.memory_space<vmem>>, vector<1x32x32xbf16>
    %47 = vector.shape_cast %46 : vector<1x32x32xbf16> to vector<32x32xbf16>
    %cst_30 = arith.constant dense<0.000000e+00> : vector<16x32xf32>
    %48 = tpu.matmul %31, %47, %cst_30 {dimension_numbers = #tpu.dot_dimension_numbers<[1], [0], [0], [1], [0, 0, 1, 1], [], []>} : vector<16x32xbf16>, vector<32x32xbf16>, vector<16x32xf32> -> vector<16x32xf32>
    %c0_31 = arith.constant 0 : index
    %c0_32 = arith.constant 0 : index
    %c0_33 = arith.constant 0 : index
    %49 = vector.load %arg9[%c0_31, %c0_32, %c0_33] : memref<1x1x32xf32, #tpu.memory_space<vmem>>, vector<1x1x32xf32>
    %50 = vector.shape_cast %49 : vector<1x1x32xf32> to vector<1x32xf32>
    %51 = vector.broadcast %50 : vector<1x32xf32> to vector<16x32xf32>
    %52 = arith.addf %48, %51 : vector<16x32xf32>
    %cst_34 = arith.constant 0.353553385 : f32
    %53 = vector.broadcast %cst_34 : f32 to vector<16x32xf32>
    %54 = arith.mulf %38, %53 : vector<16x32xf32>
    %55 = arith.truncf %54 : vector<16x32xf32> to vector<16x32xbf16>
    %56 = vector.shape_cast %55 : vector<16x32xbf16> to vector<2x8x32xbf16>
    %57 = arith.truncf %45 : vector<16x32xf32> to vector<16x32xbf16>
    %58 = vector.shape_cast %57 : vector<16x32xbf16> to vector<2x8x32xbf16>
    %59 = arith.truncf %52 : vector<16x32xf32> to vector<16x32xbf16>
    %60 = vector.shape_cast %59 : vector<16x32xbf16> to vector<2x8x32xbf16>
    %61 = vector.extract_strided_slice %56 {offsets = [0, 0, 0], sizes = [2, 8, 8], strides = [1, 1, 1]} : vector<2x8x32xbf16> to vector<2x8x8xbf16>
    %62 = vector.extract_strided_slice %58 {offsets = [0, 0, 0], sizes = [2, 8, 8], strides = [1, 1, 1]} : vector<2x8x32xbf16> to vector<2x8x8xbf16>
    "tpu.trace_start"() <{level = 10 : i32, message = "bqd,bkd->bqk"}> : () -> ()
    %cst_35 = arith.constant dense<0.000000e+00> : vector<2x8x8xf32>
    %63 = tpu.matmul %61, %62, %cst_35 {dimension_numbers = #tpu.dot_dimension_numbers<[2], [2], [1], [1], [0, 0, 0, 1, 1, 1], [0], [0]>} : vector<2x8x8xbf16>, vector<2x8x8xbf16>, vector<2x8x8xf32> -> vector<2x8x8xf32>
    "tpu.trace_stop"() : () -> ()
    %cst_36 = arith.constant dense<0xFF800000> : vector<2x8xf32>
    %64 = vector.multi_reduction <maximumf>, %63, %cst_36 [2] : vector<2x8x8xf32> to vector<2x8xf32>
    %65 = vector.shape_cast %64 : vector<2x8xf32> to vector<2x8x1xf32>
    %66 = vector.broadcast %65 : vector<2x8x1xf32> to vector<2x8x8xf32>
    %67 = arith.subf %63, %66 : vector<2x8x8xf32>
    %68 = math.exp %67 : vector<2x8x8xf32>
    %cst_37 = arith.constant dense<0.000000e+00> : vector<2x8xf32>
    %69 = vector.multi_reduction <add>, %68, %cst_37 [2] : vector<2x8x8xf32> to vector<2x8xf32>
    %70 = vector.shape_cast %69 : vector<2x8xf32> to vector<2x8x1xf32>
    %71 = tpu.reciprocal %70 {approx = true} : vector<2x8x1xf32> -> vector<2x8x1xf32>
    %72 = vector.broadcast %71 : vector<2x8x1xf32> to vector<2x8x8xf32>
    %73 = arith.mulf %68, %72 : vector<2x8x8xf32>
    %74 = arith.truncf %73 : vector<2x8x8xf32> to vector<2x8x8xbf16>
    %75 = vector.extract_strided_slice %60 {offsets = [0, 0, 0], sizes = [2, 8, 8], strides = [1, 1, 1]} : vector<2x8x32xbf16> to vector<2x8x8xbf16>
    "tpu.trace_start"() <{level = 10 : i32, message = "bqk,bkd->bqd"}> : () -> ()
    %cst_38 = arith.constant dense<0.000000e+00> : vector<2x8x8xf32>
    %76 = tpu.matmul %74, %75, %cst_38 {dimension_numbers = #tpu.dot_dimension_numbers<[2], [1], [1], [2], [0, 0, 0, 1, 1, 2], [0], [0]>} : vector<2x8x8xbf16>, vector<2x8x8xbf16>, vector<2x8x8xf32> -> vector<2x8x8xf32>
    "tpu.trace_stop"() : () -> ()
    %77 = arith.truncf %76 : vector<2x8x8xf32> to vector<2x8x8xbf16>
    %c0_39 = arith.constant 0 : index
    %c0_40 = arith.constant 0 : index
    %c0_41 = arith.constant 0 : index
    %78 = vector.load %arg22[%c0_39, %c0_40, %c0_41] : memref<2x8x32xbf16, #tpu.memory_space<vmem>>, vector<2x8x8xbf16>
    tpu.vector_store %arg22[%c0_39, %c0_40, %c0_41], %77 {strides = array<i32>} : memref<2x8x32xbf16, #tpu.memory_space<vmem>>, vector<2x8x8xbf16>,
    %79 = vector.extract_strided_slice %56 {offsets = [0, 0, 8], sizes = [2, 8, 8], strides = [1, 1, 1]} : vector<2x8x32xbf16> to vector<2x8x8xbf16>
    %80 = vector.extract_strided_slice %58 {offsets = [0, 0, 8], sizes = [2, 8, 8], strides = [1, 1, 1]} : vector<2x8x32xbf16> to vector<2x8x8xbf16>
    "tpu.trace_start"() <{level = 10 : i32, message = "bqd,bkd->bqk"}> : () -> ()
    %cst_42 = arith.constant dense<0.000000e+00> : vector<2x8x8xf32>
    %81 = tpu.matmul %79, %80, %cst_42 {dimension_numbers = #tpu.dot_dimension_numbers<[2], [2], [1], [1], [0, 0, 0, 1, 1, 1], [0], [0]>} : vector<2x8x8xbf16>, vector<2x8x8xbf16>, vector<2x8x8xf32> -> vector<2x8x8xf32>
    "tpu.trace_stop"() : () -> ()
    %cst_43 = arith.constant dense<0xFF800000> : vector<2x8xf32>
    %82 = vector.multi_reduction <maximumf>, %81, %cst_43 [2] : vector<2x8x8xf32> to vector<2x8xf32>
    %83 = vector.shape_cast %82 : vector<2x8xf32> to vector<2x8x1xf32>
    %84 = vector.broadcast %83 : vector<2x8x1xf32> to vector<2x8x8xf32>
    %85 = arith.subf %81, %84 : vector<2x8x8xf32>
    %86 = math.exp %85 : vector<2x8x8xf32>
    %cst_44 = arith.constant dense<0.000000e+00> : vector<2x8xf32>
    %87 = vector.multi_reduction <add>, %86, %cst_44 [2] : vector<2x8x8xf32> to vector<2x8xf32>
    %88 = vector.shape_cast %87 : vector<2x8xf32> to vector<2x8x1xf32>
    %89 = tpu.reciprocal %88 {approx = true} : vector<2x8x1xf32> -> vector<2x8x1xf32>
    %90 = vector.broadcast %89 : vector<2x8x1xf32> to vector<2x8x8xf32>
    %91 = arith.mulf %86, %90 : vector<2x8x8xf32>
    %92 = arith.truncf %91 : vector<2x8x8xf32> to vector<2x8x8xbf16>
    %93 = vector.extract_strided_slice %60 {offsets = [0, 0, 8], sizes = [2, 8, 8], strides = [1, 1, 1]} : vector<2x8x32xbf16> to vector<2x8x8xbf16>
    "tpu.trace_start"() <{level = 10 : i32, message = "bqk,bkd->bqd"}> : () -> ()
    %cst_45 = arith.constant dense<0.000000e+00> : vector<2x8x8xf32>
    %94 = tpu.matmul %92, %93, %cst_45 {dimension_numbers = #tpu.dot_dimension_numbers<[2], [1], [1], [2], [0, 0, 0, 1, 1, 2], [0], [0]>} : vector<2x8x8xbf16>, vector<2x8x8xbf16>, vector<2x8x8xf32> -> vector<2x8x8xf32>
    "tpu.trace_stop"() : () -> ()
    %95 = arith.truncf %94 : vector<2x8x8xf32> to vector<2x8x8xbf16>
    %c0_46 = arith.constant 0 : index
    %c0_47 = arith.constant 0 : index
    %c8 = arith.constant 8 : index
    %96 = vector.load %arg22[%c0_46, %c0_47, %c8] : memref<2x8x32xbf16, #tpu.memory_space<vmem>>, vector<2x8x8xbf16>
    tpu.vector_store %arg22[%c0_46, %c0_47, %c8], %95 {strides = array<i32>} : memref<2x8x32xbf16, #tpu.memory_space<vmem>>, vector<2x8x8xbf16>,
    %97 = vector.extract_strided_slice %56 {offsets = [0, 0, 16], sizes = [2, 8, 8], strides = [1, 1, 1]} : vector<2x8x32xbf16> to vector<2x8x8xbf16>
    %98 = vector.extract_strided_slice %58 {offsets = [0, 0, 16], sizes = [2, 8, 8], strides = [1, 1, 1]} : vector<2x8x32xbf16> to vector<2x8x8xbf16>
    "tpu.trace_start"() <{level = 10 : i32, message = "bqd,bkd->bqk"}> : () -> ()
    %cst_48 = arith.constant dense<0.000000e+00> : vector<2x8x8xf32>
    %99 = tpu.matmul %97, %98, %cst_48 {dimension_numbers = #tpu.dot_dimension_numbers<[2], [2], [1], [1], [0, 0, 0, 1, 1, 1], [0], [0]>} : vector<2x8x8xbf16>, vector<2x8x8xbf16>, vector<2x8x8xf32> -> vector<2x8x8xf32>
    "tpu.trace_stop"() : () -> ()
    %cst_49 = arith.constant dense<0xFF800000> : vector<2x8xf32>
    %100 = vector.multi_reduction <maximumf>, %99, %cst_49 [2] : vector<2x8x8xf32> to vector<2x8xf32>
    %101 = vector.shape_cast %100 : vector<2x8xf32> to vector<2x8x1xf32>
    %102 = vector.broadcast %101 : vector<2x8x1xf32> to vector<2x8x8xf32>
    %103 = arith.subf %99, %102 : vector<2x8x8xf32>
    %104 = math.exp %103 : vector<2x8x8xf32>
    %cst_50 = arith.constant dense<0.000000e+00> : vector<2x8xf32>
    %105 = vector.multi_reduction <add>, %104, %cst_50 [2] : vector<2x8x8xf32> to vector<2x8xf32>
    %106 = vector.shape_cast %105 : vector<2x8xf32> to vector<2x8x1xf32>
    %107 = tpu.reciprocal %106 {approx = true} : vector<2x8x1xf32> -> vector<2x8x1xf32>
    %108 = vector.broadcast %107 : vector<2x8x1xf32> to vector<2x8x8xf32>
    %109 = arith.mulf %104, %108 : vector<2x8x8xf32>
    %110 = arith.truncf %109 : vector<2x8x8xf32> to vector<2x8x8xbf16>
    %111 = vector.extract_strided_slice %60 {offsets = [0, 0, 16], sizes = [2, 8, 8], strides = [1, 1, 1]} : vector<2x8x32xbf16> to vector<2x8x8xbf16>
    "tpu.trace_start"() <{level = 10 : i32, message = "bqk,bkd->bqd"}> : () -> ()
    %cst_51 = arith.constant dense<0.000000e+00> : vector<2x8x8xf32>
    %112 = tpu.matmul %110, %111, %cst_51 {dimension_numbers = #tpu.dot_dimension_numbers<[2], [1], [1], [2], [0, 0, 0, 1, 1, 2], [0], [0]>} : vector<2x8x8xbf16>, vector<2x8x8xbf16>, vector<2x8x8xf32> -> vector<2x8x8xf32>
    "tpu.trace_stop"() : () -> ()
    %113 = arith.truncf %112 : vector<2x8x8xf32> to vector<2x8x8xbf16>
    %c0_52 = arith.constant 0 : index
    %c0_53 = arith.constant 0 : index
    %c16 = arith.constant 16 : index
    %114 = vector.load %arg22[%c0_52, %c0_53, %c16] : memref<2x8x32xbf16, #tpu.memory_space<vmem>>, vector<2x8x8xbf16>
    tpu.vector_store %arg22[%c0_52, %c0_53, %c16], %113 {strides = array<i32>} : memref<2x8x32xbf16, #tpu.memory_space<vmem>>, vector<2x8x8xbf16>,
    %115 = vector.extract_strided_slice %56 {offsets = [0, 0, 24], sizes = [2, 8, 8], strides = [1, 1, 1]} : vector<2x8x32xbf16> to vector<2x8x8xbf16>
    %116 = vector.extract_strided_slice %58 {offsets = [0, 0, 24], sizes = [2, 8, 8], strides = [1, 1, 1]} : vector<2x8x32xbf16> to vector<2x8x8xbf16>
    "tpu.trace_start"() <{level = 10 : i32, message = "bqd,bkd->bqk"}> : () -> ()
    %cst_54 = arith.constant dense<0.000000e+00> : vector<2x8x8xf32>
    %117 = tpu.matmul %115, %116, %cst_54 {dimension_numbers = #tpu.dot_dimension_numbers<[2], [2], [1], [1], [0, 0, 0, 1, 1, 1], [0], [0]>} : vector<2x8x8xbf16>, vector<2x8x8xbf16>, vector<2x8x8xf32> -> vector<2x8x8xf32>
    "tpu.trace_stop"() : () -> ()
    %cst_55 = arith.constant dense<0xFF800000> : vector<2x8xf32>
    %118 = vector.multi_reduction <maximumf>, %117, %cst_55 [2] : vector<2x8x8xf32> to vector<2x8xf32>
    %119 = vector.shape_cast %118 : vector<2x8xf32> to vector<2x8x1xf32>
    %120 = vector.broadcast %119 : vector<2x8x1xf32> to vector<2x8x8xf32>
    %121 = arith.subf %117, %120 : vector<2x8x8xf32>
    %122 = math.exp %121 : vector<2x8x8xf32>
    %cst_56 = arith.constant dense<0.000000e+00> : vector<2x8xf32>
    %123 = vector.multi_reduction <add>, %122, %cst_56 [2] : vector<2x8x8xf32> to vector<2x8xf32>
    %124 = vector.shape_cast %123 : vector<2x8xf32> to vector<2x8x1xf32>
    %125 = tpu.reciprocal %124 {approx = true} : vector<2x8x1xf32> -> vector<2x8x1xf32>
    %126 = vector.broadcast %125 : vector<2x8x1xf32> to vector<2x8x8xf32>
    %127 = arith.mulf %122, %126 : vector<2x8x8xf32>
    %128 = arith.truncf %127 : vector<2x8x8xf32> to vector<2x8x8xbf16>
    %129 = vector.extract_strided_slice %60 {offsets = [0, 0, 24], sizes = [2, 8, 8], strides = [1, 1, 1]} : vector<2x8x32xbf16> to vector<2x8x8xbf16>
    "tpu.trace_start"() <{level = 10 : i32, message = "bqk,bkd->bqd"}> : () -> ()
    %cst_57 = arith.constant dense<0.000000e+00> : vector<2x8x8xf32>
    %130 = tpu.matmul %128, %129, %cst_57 {dimension_numbers = #tpu.dot_dimension_numbers<[2], [1], [1], [2], [0, 0, 0, 1, 1, 2], [0], [0]>} : vector<2x8x8xbf16>, vector<2x8x8xbf16>, vector<2x8x8xf32> -> vector<2x8x8xf32>
    "tpu.trace_stop"() : () -> ()
    %131 = arith.truncf %130 : vector<2x8x8xf32> to vector<2x8x8xbf16>
    %c0_58 = arith.constant 0 : index
    %c0_59 = arith.constant 0 : index
    %c24 = arith.constant 24 : index
    %132 = vector.load %arg22[%c0_58, %c0_59, %c24] : memref<2x8x32xbf16, #tpu.memory_space<vmem>>, vector<2x8x8xbf16>
    tpu.vector_store %arg22[%c0_58, %c0_59, %c24], %131 {strides = array<i32>} : memref<2x8x32xbf16, #tpu.memory_space<vmem>>, vector<2x8x8xbf16>,
    %c0_60 = arith.constant 0 : index
    %c0_61 = arith.constant 0 : index
    %c0_62 = arith.constant 0 : index
    %133 = vector.load %arg22[%c0_60, %c0_61, %c0_62] : memref<2x8x32xbf16, #tpu.memory_space<vmem>>, vector<2x8x32xbf16>
    %134 = vector.shape_cast %133 : vector<2x8x32xbf16> to vector<16x32xbf16>
    %c0_63 = arith.constant 0 : index
    %c0_64 = arith.constant 0 : index
    %c0_65 = arith.constant 0 : index
    %135 = vector.load %arg10[%c0_63, %c0_64, %c0_65] : memref<1x32x32xbf16, #tpu.memory_space<vmem>>, vector<1x32x32xbf16>
    %136 = vector.shape_cast %135 : vector<1x32x32xbf16> to vector<32x32xbf16>
    %cst_66 = arith.constant dense<0.000000e+00> : vector<16x32xf32>
    %137 = tpu.matmul %134, %136, %cst_66 {dimension_numbers = #tpu.dot_dimension_numbers<[1], [0], [0], [1], [0, 0, 1, 1], [], []>} : vector<16x32xbf16>, vector<32x32xbf16>, vector<16x32xf32> -> vector<16x32xf32>
    %138 = arith.addf %4, %137 : vector<16x32xf32>
    %c0_67 = arith.constant 0 : index
    %c0_68 = arith.constant 0 : index
    %c0_69 = arith.constant 0 : index
    %139 = vector.load %arg11[%c0_67, %c0_68, %c0_69] : memref<1x1x32xf32, #tpu.memory_space<vmem>>, vector<1x1x32xf32>
    %140 = vector.shape_cast %139 : vector<1x1x32xf32> to vector<1x32xf32>
    %141 = vector.broadcast %140 : vector<1x32xf32> to vector<16x32xf32>
    %142 = arith.addf %138, %141 : vector<16x32xf32>
    %c0_70 = arith.constant 0 : index
    %c0_71 = arith.constant 0 : index
    %c0_72 = arith.constant 0 : index
    %143 = vector.load %arg12[%c0_70, %c0_71, %c0_72] : memref<1x1x32xf32, #tpu.memory_space<vmem>>, vector<1x1x32xf32>
    %144 = vector.shape_cast %143 : vector<1x1x32xf32> to vector<1x32xf32>
    %c0_73 = arith.constant 0 : index
    %c0_74 = arith.constant 0 : index
    %c0_75 = arith.constant 0 : index
    %145 = vector.load %arg13[%c0_73, %c0_74, %c0_75] : memref<1x1x32xf32, #tpu.memory_space<vmem>>, vector<1x1x32xf32>
    %146 = vector.shape_cast %145 : vector<1x1x32xf32> to vector<1x32xf32>
    %cst_76 = arith.constant dense<0.000000e+00> : vector<16xf32>
    %147 = vector.multi_reduction <add>, %142, %cst_76 [1] : vector<16x32xf32> to vector<16xf32>
    %148 = vector.shape_cast %147 : vector<16xf32> to vector<16x1xf32>
    %cst_77 = arith.constant 3.200000e+01 : f32
    %149 = vector.broadcast %cst_77 : f32 to vector<16x1xf32>
    %150 = arith.divf %148, %149 : vector<16x1xf32>
    %151 = vector.broadcast %150 : vector<16x1xf32> to vector<16x32xf32>
    %152 = arith.subf %142, %151 : vector<16x32xf32>
    %153 = arith.mulf %152, %152 : vector<16x32xf32>
    %cst_78 = arith.constant dense<0.000000e+00> : vector<16xf32>
    %154 = vector.multi_reduction <add>, %153, %cst_78 [1] : vector<16x32xf32> to vector<16xf32>
    %155 = vector.shape_cast %154 : vector<16xf32> to vector<16x1xf32>
    %cst_79 = arith.constant 3.200000e+01 : f32
    %156 = vector.broadcast %cst_79 : f32 to vector<16x1xf32>
    %157 = arith.divf %155, %156 : vector<16x1xf32>
    %158 = vector.broadcast %150 : vector<16x1xf32> to vector<16x32xf32>
    %159 = arith.subf %142, %158 : vector<16x32xf32>
    %cst_80 = arith.constant 9.99999974E-6 : f32
    %160 = vector.broadcast %cst_80 : f32 to vector<16x1xf32>
    %161 = arith.addf %157, %160 : vector<16x1xf32>
    %162 = math.rsqrt %161 : vector<16x1xf32>
    %163 = vector.broadcast %162 : vector<16x1xf32> to vector<16x32xf32>
    %164 = arith.mulf %159, %163 : vector<16x32xf32>
    %165 = vector.broadcast %144 : vector<1x32xf32> to vector<16x32xf32>
    %166 = arith.mulf %164, %165 : vector<16x32xf32>
    %167 = vector.broadcast %146 : vector<1x32xf32> to vector<16x32xf32>
    %168 = arith.addf %166, %167 : vector<16x32xf32>
    %169 = arith.truncf %168 : vector<16x32xf32> to vector<16x32xbf16>
    %c0_81 = arith.constant 0 : index
    %c0_82 = arith.constant 0 : index
    %c0_83 = arith.constant 0 : index
    %170 = vector.load %arg14[%c0_81, %c0_82, %c0_83] : memref<1x32x128xbf16, #tpu.memory_space<vmem>>, vector<1x32x128xbf16>
    %171 = vector.shape_cast %170 : vector<1x32x128xbf16> to vector<32x128xbf16>
    %cst_84 = arith.constant dense<0.000000e+00> : vector<16x128xf32>
    %172 = tpu.matmul %169, %171, %cst_84 {dimension_numbers = #tpu.dot_dimension_numbers<[1], [0], [0], [1], [0, 0, 1, 1], [], []>} : vector<16x32xbf16>, vector<32x128xbf16>, vector<16x128xf32> -> vector<16x128xf32>
    %c0_85 = arith.constant 0 : index
    %c0_86 = arith.constant 0 : index
    %c0_87 = arith.constant 0 : index
    %173 = vector.load %arg15[%c0_85, %c0_86, %c0_87] : memref<1x1x128xf32, #tpu.memory_space<vmem>>, vector<1x1x128xf32>
    %174 = vector.shape_cast %173 : vector<1x1x128xf32> to vector<1x128xf32>
    %175 = vector.broadcast %174 : vector<1x128xf32> to vector<16x128xf32>
    %176 = arith.addf %172, %175 : vector<16x128xf32>
    %cst_88 = arith.constant 5.000000e-01 : f32
    %177 = vector.broadcast %cst_88 : f32 to vector<16x128xf32>
    %178 = arith.mulf %177, %176 : vector<16x128xf32>
    %cst_89 = arith.constant 0.707106769 : f32
    %179 = vector.broadcast %cst_89 : f32 to vector<16x128xf32>
    %180 = arith.mulf %176, %179 : vector<16x128xf32>
    %181 = math.erf %180 : vector<16x128xf32>
    %cst_90 = arith.constant 1.000000e+00 : f32
    %182 = vector.broadcast %cst_90 : f32 to vector<16x128xf32>
    %183 = arith.addf %182, %181 : vector<16x128xf32>
    %184 = arith.mulf %178, %183 : vector<16x128xf32>
    %185 = arith.truncf %184 : vector<16x128xf32> to vector<16x128xbf16>
    %c0_91 = arith.constant 0 : index
    %c0_92 = arith.constant 0 : index
    %c0_93 = arith.constant 0 : index
    %186 = vector.load %arg16[%c0_91, %c0_92, %c0_93] : memref<1x128x32xbf16, #tpu.memory_space<vmem>>, vector<1x128x32xbf16>
    %187 = vector.shape_cast %186 : vector<1x128x32xbf16> to vector<128x32xbf16>
    %cst_94 = arith.constant dense<0.000000e+00> : vector<16x32xf32>
    %188 = tpu.matmul %185, %187, %cst_94 {dimension_numbers = #tpu.dot_dimension_numbers<[1], [0], [0], [1], [0, 0, 1, 1], [], []>} : vector<16x128xbf16>, vector<128x32xbf16>, vector<16x32xf32> -> vector<16x32xf32>
    %c0_95 = arith.constant 0 : index
    %c0_96 = arith.constant 0 : index
    %c0_97 = arith.constant 0 : index
    %189 = vector.load %arg17[%c0_95, %c0_96, %c0_97] : memref<1x1x32xf32, #tpu.memory_space<vmem>>, vector<1x1x32xf32>
    %190 = vector.shape_cast %189 : vector<1x1x32xf32> to vector<1x32xf32>
    %191 = vector.broadcast %190 : vector<1x32xf32> to vector<16x32xf32>
    %192 = arith.addf %188, %191 : vector<16x32xf32>
    %193 = arith.addf %142, %192 : vector<16x32xf32>
    %194 = vector.shape_cast %193 : vector<16x32xf32> to vector<2x8x32xf32>
    %c0_98 = arith.constant 0 : index
    %c0_99 = arith.constant 0 : index
    %c0_100 = arith.constant 0 : index
    %195 = vector.load %arg21[%c0_98, %c0_99, %c0_100] : memref<2x8x32xf32, #tpu.memory_space<vmem>>, vector<2x8x32xf32>
    tpu.vector_store %arg21[%c0_98, %c0_99, %c0_100], %194 {strides = array<i32>} : memref<2x8x32xf32, #tpu.memory_space<vmem>>, vector<2x8x32xf32>,
    %c1_i32 = arith.constant 1 : i32
    %196 = arith.cmpi eq, %arg0, %c1_i32 : i32
    %197 = arith.extui %196 : i1 to i32
    %c0_i32_101 = arith.constant 0 : i32
    %198 = arith.cmpi ne, %197, %c0_i32_101 : i32
    scf.if %198 {
      %c0_102 = arith.constant 0 : index
      %c0_103 = arith.constant 0 : index
      %199 = vector.load %arg18[%c0_102, %c0_103] : memref<1x32xf32, #tpu.memory_space<vmem>>, vector<1x32xf32>
      %c0_104 = arith.constant 0 : index
      %c0_105 = arith.constant 0 : index
      %200 = vector.load %arg19[%c0_104, %c0_105] : memref<1x32xf32, #tpu.memory_space<vmem>>, vector<1x32xf32>
      %cst_106 = arith.constant dense<0.000000e+00> : vector<16xf32>
      %201 = vector.multi_reduction <add>, %193, %cst_106 [1] : vector<16x32xf32> to vector<16xf32>
      %202 = vector.shape_cast %201 : vector<16xf32> to vector<16x1xf32>
      %cst_107 = arith.constant 3.200000e+01 : f32
      %203 = vector.broadcast %cst_107 : f32 to vector<16x1xf32>
      %204 = arith.divf %202, %203 : vector<16x1xf32>
      %205 = vector.broadcast %204 : vector<16x1xf32> to vector<16x32xf32>
      %206 = arith.subf %193, %205 : vector<16x32xf32>
      %207 = arith.mulf %206, %206 : vector<16x32xf32>
      %cst_108 = arith.constant dense<0.000000e+00> : vector<16xf32>
      %208 = vector.multi_reduction <add>, %207, %cst_108 [1] : vector<16x32xf32> to vector<16xf32>
      %209 = vector.shape_cast %208 : vector<16xf32> to vector<16x1xf32>
      %cst_109 = arith.constant 3.200000e+01 : f32
      %210 = vector.broadcast %cst_109 : f32 to vector<16x1xf32>
      %211 = arith.divf %209, %210 : vector<16x1xf32>
      %212 = vector.broadcast %204 : vector<16x1xf32> to vector<16x32xf32>
      %213 = arith.subf %193, %212 : vector<16x32xf32>
      %cst_110 = arith.constant 9.99999974E-6 : f32
      %214 = vector.broadcast %cst_110 : f32 to vector<16x1xf32>
      %215 = arith.addf %211, %214 : vector<16x1xf32>
      %216 = math.rsqrt %215 : vector<16x1xf32>
      %217 = vector.broadcast %216 : vector<16x1xf32> to vector<16x32xf32>
      %218 = arith.mulf %213, %217 : vector<16x32xf32>
      %219 = vector.broadcast %199 : vector<1x32xf32> to vector<16x32xf32>
      %220 = arith.mulf %218, %219 : vector<16x32xf32>
      %221 = vector.broadcast %200 : vector<1x32xf32> to vector<16x32xf32>
      %222 = arith.addf %220, %221 : vector<16x32xf32>
      %223 = vector.shape_cast %222 : vector<16x32xf32> to vector<2x8x32xf32>
      %c0_111 = arith.constant 0 : index
      %c0_112 = arith.constant 0 : index
      %c0_113 = arith.constant 0 : index
      %224 = vector.load %arg20[%c0_111, %c0_112, %c0_113] : memref<2x8x32xf32, #tpu.memory_space<vmem>>, vector<2x8x32xf32>
      tpu.vector_store %arg20[%c0_111, %c0_112, %c0_113], %223 {strides = array<i32>} : memref<2x8x32xf32, #tpu.memory_space<vmem>>, vector<2x8x32xf32>,
    } else {
    }
    return
  }
  func.func @transform_1(%arg0: i32) -> (i32, i32, i32) {
    %c0_i32 = arith.constant 0 : i32
    %c0_i32_0 = arith.constant 0 : i32
    %c0_i32_1 = arith.constant 0 : i32
    return %arg0, %c0_i32, %c0_i32_0 : i32, i32, i32
  }
  func.func @transform_2(%arg0: i32) -> (i32, i32, i32) {
    %c0_i32 = arith.constant 0 : i32
    %c0_i32_0 = arith.constant 0 : i32
    %c0_i32_1 = arith.constant 0 : i32
    return %arg0, %c0_i32, %c0_i32_0 : i32, i32, i32
  }
  func.func @transform_3(%arg0: i32) -> (i32, i32, i32) {
    %c0_i32 = arith.constant 0 : i32
    %c0_i32_0 = arith.constant 0 : i32
    %c0_i32_1 = arith.constant 0 : i32
    return %arg0, %c0_i32, %c0_i32_0 : i32, i32, i32
  }
  func.func @transform_4(%arg0: i32) -> (i32, i32, i32) {
    %c0_i32 = arith.constant 0 : i32
    %c0_i32_0 = arith.constant 0 : i32
    %c0_i32_1 = arith.constant 0 : i32
    return %arg0, %c0_i32, %c0_i32_0 : i32, i32, i32
  }
  func.func @transform_5(%arg0: i32) -> (i32, i32, i32) {
    %c0_i32 = arith.constant 0 : i32
    %c0_i32_0 = arith.constant 0 : i32
    %c0_i32_1 = arith.constant 0 : i32
    return %arg0, %c0_i32, %c0_i32_0 : i32, i32, i32
  }
  func.func @transform_6(%arg0: i32) -> (i32, i32, i32) {
    %c0_i32 = arith.constant 0 : i32
    %c0_i32_0 = arith.constant 0 : i32
    %c0_i32_1 = arith.constant 0 : i32
    return %arg0, %c0_i32, %c0_i32_0 : i32, i32, i32
  }
  func.func @transform_7(%arg0: i32) -> (i32, i32, i32) {
    %c0_i32 = arith.constant 0 : i32
    %c0_i32_0 = arith.constant 0 : i32
    %c0_i32_1 = arith.constant 0 : i32
    return %arg0, %c0_i32, %c0_i32_0 : i32, i32, i32
  }
  func.func @transform_8(%arg0: i32) -> (i32, i32, i32) {
    %c0_i32 = arith.constant 0 : i32
    %c0_i32_0 = arith.constant 0 : i32
    %c0_i32_1 = arith.constant 0 : i32
    return %arg0, %c0_i32, %c0_i32_0 : i32, i32, i32
  }
  func.func @transform_9(%arg0: i32) -> (i32, i32, i32) {
    %c0_i32 = arith.constant 0 : i32
    %c0_i32_0 = arith.constant 0 : i32
    %c0_i32_1 = arith.constant 0 : i32
    return %arg0, %c0_i32, %c0_i32_0 : i32, i32, i32
  }
  func.func @transform_10(%arg0: i32) -> (i32, i32, i32) {
    %c0_i32 = arith.constant 0 : i32
    %c0_i32_0 = arith.constant 0 : i32
    %c0_i32_1 = arith.constant 0 : i32
    return %arg0, %c0_i32, %c0_i32_0 : i32, i32, i32
  }
  func.func @transform_11(%arg0: i32) -> (i32, i32, i32) {
    %c0_i32 = arith.constant 0 : i32
    %c0_i32_0 = arith.constant 0 : i32
    %c0_i32_1 = arith.constant 0 : i32
    return %arg0, %c0_i32, %c0_i32_0 : i32, i32, i32
  }
  func.func @transform_12(%arg0: i32) -> (i32, i32, i32) {
    %c0_i32 = arith.constant 0 : i32
    %c0_i32_0 = arith.constant 0 : i32
    %c0_i32_1 = arith.constant 0 : i32
    return %arg0, %c0_i32, %c0_i32_0 : i32, i32, i32
  }
  func.func @transform_13(%arg0: i32) -> (i32, i32, i32) {
    %c0_i32 = arith.constant 0 : i32
    %c0_i32_0 = arith.constant 0 : i32
    %c0_i32_1 = arith.constant 0 : i32
    return %arg0, %c0_i32, %c0_i32_0 : i32, i32, i32
  }
  func.func @transform_14(%arg0: i32) -> (i32, i32, i32) {
    %c0_i32 = arith.constant 0 : i32
    %c0_i32_0 = arith.constant 0 : i32
    %c0_i32_1 = arith.constant 0 : i32
    return %arg0, %c0_i32, %c0_i32_0 : i32, i32, i32
  }
  func.func @transform_15(%arg0: i32) -> (i32, i32, i32) {
    %c0_i32 = arith.constant 0 : i32
    %c0_i32_0 = arith.constant 0 : i32
    %c0_i32_1 = arith.constant 0 : i32
    return %arg0, %c0_i32, %c0_i32_0 : i32, i32, i32
  }
  func.func @transform_16(%arg0: i32) -> (i32, i32, i32) {
    %c0_i32 = arith.constant 0 : i32
    %c0_i32_0 = arith.constant 0 : i32
    %c0_i32_1 = arith.constant 0 : i32
    return %arg0, %c0_i32, %c0_i32_0 : i32, i32, i32
  }
  func.func @transform_17(%arg0: i32) -> (i32, i32) {
    %c0_i32 = arith.constant 0 : i32
    %c0_i32_0 = arith.constant 0 : i32
    %c0_i32_1 = arith.constant 0 : i32
    return %c0_i32, %c0_i32_0 : i32, i32
  }
  func.func @transform_18(%arg0: i32) -> (i32, i32) {
    %c0_i32 = arith.constant 0 : i32
    %c0_i32_0 = arith.constant 0 : i32
    %c0_i32_1 = arith.constant 0 : i32
    return %c0_i32, %c0_i32_0 : i32, i32
  }
  func.func @transform_19(%arg0: i32) -> (i32, i32, i32) {
    %c0_i32 = arith.constant 0 : i32
    %c0_i32_0 = arith.constant 0 : i32
    %c0_i32_1 = arith.constant 0 : i32
    %c0_i32_2 = arith.constant 0 : i32
    return %c0_i32, %c0_i32_0, %c0_i32_1 : i32, i32, i32
  }
}

</mosaic_0001>

<llo_original>
// kernel: tpu_custom_call.1
$region0: #{tpu_custom_call.1}
  #allocation0 [shape = 'u32[]', space=smem, size = 0x4, offset = 0x4, fixed_abs, tag = 'smem constant byte address 0x4 - core index']
  #allocation1 [shape = 'u32[144,128]{1,0:T(1,128)}', space=vmem, size = 0x12000, scoped, tag = 'internal scratch']
  #allocation2 [shape = 'f32[2,8,32]{2,1,0:T(8,128)}', space=vmem, size = 0x2000, scoped, tag = 'scratch operand']
  #allocation3 [shape = 'bf16[2,8,32]{2,1,0:T(8,128)(2,1)}', space=vmem, size = 0x1000, scoped, tag = 'scratch operand']
  #allocation7 [shape = 's32[]', space=sflag, size = 0x4, offset = 0, fixed_abs, tag = 'sflag constant byte address 0x0 - dummy sync flag']
  #allocation8 [shape = 's32[]', space=sflag, size = 0x4, offset = 0, fixed_abs, tag = 'sflag constant byte address 0x0 - dummy sync flag']
  #allocation9 [shape = 'u32[]', space=smem, size = 0x4, offset = 0x44, fixed_abs, tag = 'smem constant byte address 0x44 - assertion arg 0']
  #allocation10 [shape = 'u32[]', space=smem, size = 0x4, offset = 0x48, fixed_abs, tag = 'smem constant byte address 0x48 - assertion arg 1']
  %s0 = inlined_call_operand.hbm [shape: f32[2,8,32], index: 0, kind: input, shape index: {}]
  %s1 = inlined_call_operand.vmem [shape: f32[2,1,32], index: 1, kind: input, shape index: {}]
  %s2 = inlined_call_operand.vmem [shape: f32[2,1,32], index: 2, kind: input, shape index: {}]
  %s3 = inlined_call_operand.vmem [shape: bf16[2,32,32], index: 3, kind: input, shape index: {}]
  %s4 = inlined_call_operand.vmem [shape: f32[2,1,32], index: 4, kind: input, shape index: {}]
  %s5 = inlined_call_operand.vmem [shape: bf16[2,32,32], index: 5, kind: input, shape index: {}]
  %s6 = inlined_call_operand.vmem [shape: f32[2,1,32], index: 6, kind: input, shape index: {}]
  %s7 = inlined_call_operand.vmem [shape: bf16[2,32,32], index: 7, kind: input, shape index: {}]
  %s8 = inlined_call_operand.vmem [shape: f32[2,1,32], index: 8, kind: input, shape index: {}]
  %s9 = inlined_call_operand.vmem [shape: bf16[2,32,32], index: 9, kind: input, shape index: {}]
  %s10 = inlined_call_operand.vmem [shape: f32[2,1,32], index: 10, kind: input, shape index: {}]
  %s11 = inlined_call_operand.vmem [shape: f32[2,1,32], index: 11, kind: input, shape index: {}]
  %s12 = inlined_call_operand.vmem [shape: f32[2,1,32], index: 12, kind: input, shape index: {}]
  %s13 = inlined_call_operand.vmem [shape: bf16[2,32,128], index: 13, kind: input, shape index: {}]
  %s14 = inlined_call_operand.vmem [shape: f32[2,1,128], index: 14, kind: input, shape index: {}]
  %s15 = inlined_call_operand.vmem [shape: bf16[2,128,32], index: 15, kind: input, shape index: {}]
  %s16 = inlined_call_operand.vmem [shape: f32[2,1,32], index: 16, kind: input, shape index: {}]
  %s17 = inlined_call_operand.vmem [shape: f32[1,32], index: 17, kind: input, shape index: {}]
  %s18 = inlined_call_operand.vmem [shape: f32[1,32], index: 18, kind: input, shape index: {}]
  %s19 = inlined_call_operand.hbm [shape: f32[2,8,32], index: 19, kind: output, shape index: {}]
  %s20 = sld [smem:[#allocation0]]
  $region118: #{tpu_custom_call.1} parent=0
    _
  %s22 = ssub.s32 1, %s20
  %s23 = scalar_select 0, %s22, %s20
  $region1: #{tpu_custom_call.1} parent=0
    #allocation4 [shape = 'u8[8192]{0}', space=vmem, size = 0x2000, scoped, tag = 'output window, operand 0, single buffered']
    #allocation5 [shape = 's32[2]{0}', space=sflag, size = 0x8, scoped, tag = 'scoped memory for tpu_custom_call.1']
    %24 = vsyncpa [#allocation5], 0
    loop: start=0, step=1, limit=4
    $region2: #{tpu_custom_call.1} parent=1 // loop_pre_header
      _
    $region3: #{tpu_custom_call.1} parent=1 // loop_header
      %s26 = sphi 0, %s30
      %p27 = scmp.ge.s32.totalorder %s26, 4
      %s36 = sphi 0, %s38
      %s39 = sphi 0, %s36
      %s40 = sphi 0, %s39
      %s56 = sphi 0, %s40
      %s62 = sphi 0, %s64
      %s65 = sphi 0, %s62
      %s66 = sphi 0, %s65
      %s82 = sphi 0, %s66
      %s88 = sphi 0, %s90
      %s91 = sphi 0, %s88
      %s92 = sphi 0, %s91
      %s108 = sphi 0, %s92
      %s114 = sphi 0, %s116
      %s117 = sphi 0, %s114
      %s118 = sphi 0, %s117
      %s134 = sphi 0, %s118
      %s140 = sphi 0, %s142
      %s143 = sphi 0, %s140
      %s144 = sphi 0, %s143
      %s160 = sphi 0, %s144
      %s166 = sphi 0, %s168
      %s169 = sphi 0, %s166
      %s170 = sphi 0, %s169
      %s186 = sphi 0, %s170
      %s192 = sphi 0, %s194
      %s195 = sphi 0, %s192
      %s196 = sphi 0, %s195
      %s212 = sphi 0, %s196
      %s218 = sphi 0, %s220
      %s221 = sphi 0, %s218
      %s222 = sphi 0, %s221
      %s238 = sphi 0, %s222
      %s244 = sphi 0, %s246
      %s247 = sphi 0, %s244
      %s248 = sphi 0, %s247
      %s264 = sphi 0, %s248
      %s270 = sphi 0, %s272
      %s273 = sphi 0, %s270
      %s274 = sphi 0, %s273
      %s290 = sphi 0, %s274
      %s296 = sphi 0, %s298
      %s299 = sphi 0, %s296
      %s300 = sphi 0, %s299
      %s316 = sphi 0, %s300
      %s322 = sphi 0, %s324
      %s325 = sphi 0, %s322
      %s326 = sphi 0, %s325
      %s342 = sphi 0, %s326
      %s348 = sphi 0, %s350
      %s351 = sphi 0, %s348
      %s352 = sphi 0, %s351
      %s368 = sphi 0, %s352
      %s374 = sphi 0, %s376
      %s377 = sphi 0, %s374
      %s378 = sphi 0, %s377
      %s394 = sphi 0, %s378
      %s400 = sphi 0, %s402
      %s403 = sphi 0, %s400
      %s404 = sphi 0, %s403
      %s420 = sphi 0, %s404
      %s426 = sphi 0, %s428
      %s429 = sphi 0, %s426
      %s430 = sphi 0, %s429
      %s446 = sphi 0, %s430
      %s450 = sphi 0, %s450
      %s452 = sphi 0, %s450
      %s453 = sphi 0, %s452
      %s467 = sphi 0, %s453
      %s471 = sphi 0, %s471
      %s473 = sphi 0, %s471
      %s474 = sphi 0, %s473
      %s488 = sphi 0, %s474
      %s492 = sphi 0, %s492
      %s494 = sphi 0, %s492
      %s495 = sphi 0, %s494
      %s509 = sphi 0, %s495
    $region4: #{tpu_custom_call.1} parent=1 // loop_header_branch
      %29 = sbr.rel (%p27) target = $region8
    $region5: #{tpu_custom_call.1} parent=1 // loop_body
      %s31 = ssub.s32 %s26, 1
      %s32 = ssub.s32 %s26, 2
      %s33 = sadd.s32 %s26, 1
      %s34 = ssub.s32 %s26, %s33
      %p35 = scmp.eq.s32.totalorder %s34, 0
      %s37 = sadd.s32 %s36, 1
      %s38 = scalar_select %p35, %s36, %s37
      %p41 = pneg %p35
      %p42 = scmp.eq.s32.totalorder %s26, 1
      %p43 = por %p41, %p42
      %p44 = scmp.ne.s32.totalorder %s36, %s39
      %p45 = scmp.eq.s32.totalorder %s26, 0
      %p46 = por %p44, %p45
      %p47 = scmp.ne.s32.totalorder %s36, %s39
      %p48 = scmp.eq.s32.totalorder %s31, 1
      %p49 = por %p47, %p48
      %p50 = scmp.ne.s32.totalorder %s39, %s40
      %p51 = scmp.eq.s32.totalorder %s31, 0
      %p52 = por %p50, %p51
      %p53 = scmp.ne.s32.totalorder %s39, %s40
      %p54 = scmp.eq.s32.totalorder %s32, 1
      %p55 = por %p53, %p54
      %p57 = scmp.ne.s32.totalorder %s40, %s56
      %p58 = scmp.eq.s32.totalorder %s32, 0
      %p59 = por %p57, %p58
      %s60 = ssub.s32 %s26, %s33
      %p61 = scmp.eq.s32.totalorder %s60, 0
      %s63 = sadd.s32 %s62, 1
      %s64 = scalar_select %p61, %s62, %s63
      %p67 = pneg %p61
      %p68 = scmp.eq.s32.totalorder %s26, 1
      %p69 = por %p67, %p68
      %p70 = scmp.ne.s32.totalorder %s62, %s65
      %p71 = scmp.eq.s32.totalorder %s26, 0
      %p72 = por %p70, %p71
      %p73 = scmp.ne.s32.totalorder %s62, %s65
      %p74 = scmp.eq.s32.totalorder %s31, 1
      %p75 = por %p73, %p74
      %p76 = scmp.ne.s32.totalorder %s65, %s66
      %p77 = scmp.eq.s32.totalorder %s31, 0
      %p78 = por %p76, %p77
      %p79 = scmp.ne.s32.totalorder %s65, %s66
      %p80 = scmp.eq.s32.totalorder %s32, 1
      %p81 = por %p79, %p80
      %p83 = scmp.ne.s32.totalorder %s66, %s82
      %p84 = scmp.eq.s32.totalorder %s32, 0
      %p85 = por %p83, %p84
      %s86 = ssub.s32 %s26, %s33
      %p87 = scmp.eq.s32.totalorder %s86, 0
      %s89 = sadd.s32 %s88, 1
      %s90 = scalar_select %p87, %s88, %s89
      %p93 = pneg %p87
      %p94 = scmp.eq.s32.totalorder %s26, 1
      %p95 = por %p93, %p94
      %p96 = scmp.ne.s32.totalorder %s88, %s91
      %p97 = scmp.eq.s32.totalorder %s26, 0
      %p98 = por %p96, %p97
      %p99 = scmp.ne.s32.totalorder %s88, %s91
      %p100 = scmp.eq.s32.totalorder %s31, 1
      %p101 = por %p99, %p100
      %p102 = scmp.ne.s32.totalorder %s91, %s92
      %p103 = scmp.eq.s32.totalorder %s31, 0
      %p104 = por %p102, %p103
      %p105 = scmp.ne.s32.totalorder %s91, %s92
      %p106 = scmp.eq.s32.totalorder %s32, 1
      %p107 = por %p105, %p106
      %p109 = scmp.ne.s32.totalorder %s92, %s108
      %p110 = scmp.eq.s32.totalorder %s32, 0
      %p111 = por %p109, %p110
      %s112 = ssub.s32 %s26, %s33
      %p113 = scmp.eq.s32.totalorder %s112, 0
      %s115 = sadd.s32 %s114, 1
      %s116 = scalar_select %p113, %s114, %s115
      %p119 = pneg %p113
      %p120 = scmp.eq.s32.totalorder %s26, 1
      %p121 = por %p119, %p120
      %p122 = scmp.ne.s32.totalorder %s114, %s117
      %p123 = scmp.eq.s32.totalorder %s26, 0
      %p124 = por %p122, %p123
      %p125 = scmp.ne.s32.totalorder %s114, %s117
      %p126 = scmp.eq.s32.totalorder %s31, 1
      %p127 = por %p125, %p126
      %p128 = scmp.ne.s32.totalorder %s117, %s118
      %p129 = scmp.eq.s32.totalorder %s31, 0
      %p130 = por %p128, %p129
      %p131 = scmp.ne.s32.totalorder %s117, %s118
      %p132 = scmp.eq.s32.totalorder %s32, 1
      %p133 = por %p131, %p132
      %p135 = scmp.ne.s32.totalorder %s118, %s134
      %p136 = scmp.eq.s32.totalorder %s32, 0
      %p137 = por %p135, %p136
      %s138 = ssub.s32 %s26, %s33
      %p139 = scmp.eq.s32.totalorder %s138, 0
      %s141 = sadd.s32 %s140, 1
      %s142 = scalar_select %p139, %s140, %s141
      %p145 = pneg %p139
      %p146 = scmp.eq.s32.totalorder %s26, 1
      %p147 = por %p145, %p146
      %p148 = scmp.ne.s32.totalorder %s140, %s143
      %p149 = scmp.eq.s32.totalorder %s26, 0
      %p150 = por %p148, %p149
      %p151 = scmp.ne.s32.totalorder %s140, %s143
      %p152 = scmp.eq.s32.totalorder %s31, 1
      %p153 = por %p151, %p152
      %p154 = scmp.ne.s32.totalorder %s143, %s144
      %p155 = scmp.eq.s32.totalorder %s31, 0
      %p156 = por %p154, %p155
      %p157 = scmp.ne.s32.totalorder %s143, %s144
      %p158 = scmp.eq.s32.totalorder %s32, 1
      %p159 = por %p157, %p158
      %p161 = scmp.ne.s32.totalorder %s144, %s160
      %p162 = scmp.eq.s32.totalorder %s32, 0
      %p163 = por %p161, %p162
      %s164 = ssub.s32 %s26, %s33
      %p165 = scmp.eq.s32.totalorder %s164, 0
      %s167 = sadd.s32 %s166, 1
      %s168 = scalar_select %p165, %s166, %s167
      %p171 = pneg %p165
      %p172 = scmp.eq.s32.totalorder %s26, 1
      %p173 = por %p171, %p172
      %p174 = scmp.ne.s32.totalorder %s166, %s169
      %p175 = scmp.eq.s32.totalorder %s26, 0
      %p176 = por %p174, %p175
      %p177 = scmp.ne.s32.totalorder %s166, %s169
      %p178 = scmp.eq.s32.totalorder %s31, 1
      %p179 = por %p177, %p178
      %p180 = scmp.ne.s32.totalorder %s169, %s170
      %p181 = scmp.eq.s32.totalorder %s31, 0
      %p182 = por %p180, %p181
      %p183 = scmp.ne.s32.totalorder %s169, %s170
      %p184 = scmp.eq.s32.totalorder %s32, 1
      %p185 = por %p183, %p184
      %p187 = scmp.ne.s32.totalorder %s170, %s186
      %p188 = scmp.eq.s32.totalorder %s32, 0
      %p189 = por %p187, %p188
      %s190 = ssub.s32 %s26, %s33
      %p191 = scmp.eq.s32.totalorder %s190, 0
      %s193 = sadd.s32 %s192, 1
      %s194 = scalar_select %p191, %s192, %s193
      %p197 = pneg %p191
      %p198 = scmp.eq.s32.totalorder %s26, 1
      %p199 = por %p197, %p198
      %p200 = scmp.ne.s32.totalorder %s192, %s195
      %p201 = scmp.eq.s32.totalorder %s26, 0
      %p202 = por %p200, %p201
      %p203 = scmp.ne.s32.totalorder %s192, %s195
      %p204 = scmp.eq.s32.totalorder %s31, 1
      %p205 = por %p203, %p204
      %p206 = scmp.ne.s32.totalorder %s195, %s196
      %p207 = scmp.eq.s32.totalorder %s31, 0
      %p208 = por %p206, %p207
      %p209 = scmp.ne.s32.totalorder %s195, %s196
      %p210 = scmp.eq.s32.totalorder %s32, 1
      %p211 = por %p209, %p210
      %p213 = scmp.ne.s32.totalorder %s196, %s212
      %p214 = scmp.eq.s32.totalorder %s32, 0
      %p215 = por %p213, %p214
      %s216 = ssub.s32 %s26, %s33
      %p217 = scmp.eq.s32.totalorder %s216, 0
      %s219 = sadd.s32 %s218, 1
      %s220 = scalar_select %p217, %s218, %s219
      %p223 = pneg %p217
      %p224 = scmp.eq.s32.totalorder %s26, 1
      %p225 = por %p223, %p224
      %p226 = scmp.ne.s32.totalorder %s218, %s221
      %p227 = scmp.eq.s32.totalorder %s26, 0
      %p228 = por %p226, %p227
      %p229 = scmp.ne.s32.totalorder %s218, %s221
      %p230 = scmp.eq.s32.totalorder %s31, 1
      %p231 = por %p229, %p230
      %p232 = scmp.ne.s32.totalorder %s221, %s222
      %p233 = scmp.eq.s32.totalorder %s31, 0
      %p234 = por %p232, %p233
      %p235 = scmp.ne.s32.totalorder %s221, %s222
      %p236 = scmp.eq.s32.totalorder %s32, 1
      %p237 = por %p235, %p236
      %p239 = scmp.ne.s32.totalorder %s222, %s238
      %p240 = scmp.eq.s32.totalorder %s32, 0
      %p241 = por %p239, %p240
      %s242 = ssub.s32 %s26, %s33
      %p243 = scmp.eq.s32.totalorder %s242, 0
      %s245 = sadd.s32 %s244, 1
      %s246 = scalar_select %p243, %s244, %s245
      %p249 = pneg %p243
      %p250 = scmp.eq.s32.totalorder %s26, 1
      %p251 = por %p249, %p250
      %p252 = scmp.ne.s32.totalorder %s244, %s247
      %p253 = scmp.eq.s32.totalorder %s26, 0
      %p254 = por %p252, %p253
      %p255 = scmp.ne.s32.totalorder %s244, %s247
      %p256 = scmp.eq.s32.totalorder %s31, 1
      %p257 = por %p255, %p256
      %p258 = scmp.ne.s32.totalorder %s247, %s248
      %p259 = scmp.eq.s32.totalorder %s31, 0
      %p260 = por %p258, %p259
      %p261 = scmp.ne.s32.totalorder %s247, %s248
      %p262 = scmp.eq.s32.totalorder %s32, 1
      %p263 = por %p261, %p262
      %p265 = scmp.ne.s32.totalorder %s248, %s264
      %p266 = scmp.eq.s32.totalorder %s32, 0
      %p267 = por %p265, %p266
      %s268 = ssub.s32 %s26, %s33
      %p269 = scmp.eq.s32.totalorder %s268, 0
      %s271 = sadd.s32 %s270, 1
      %s272 = scalar_select %p269, %s270, %s271
      %p275 = pneg %p269
      %p276 = scmp.eq.s32.totalorder %s26, 1
      %p277 = por %p275, %p276
      %p278 = scmp.ne.s32.totalorder %s270, %s273
      %p279 = scmp.eq.s32.totalorder %s26, 0
      %p280 = por %p278, %p279
      %p281 = scmp.ne.s32.totalorder %s270, %s273
      %p282 = scmp.eq.s32.totalorder %s31, 1
      %p283 = por %p281, %p282
      %p284 = scmp.ne.s32.totalorder %s273, %s274
      %p285 = scmp.eq.s32.totalorder %s31, 0
      %p286 = por %p284, %p285
      %p287 = scmp.ne.s32.totalorder %s273, %s274
      %p288 = scmp.eq.s32.totalorder %s32, 1
      %p289 = por %p287, %p288
      %p291 = scmp.ne.s32.totalorder %s274, %s290
      %p292 = scmp.eq.s32.totalorder %s32, 0
      %p293 = por %p291, %p292
      %s294 = ssub.s32 %s26, %s33
      %p295 = scmp.eq.s32.totalorder %s294, 0
      %s297 = sadd.s32 %s296, 1
      %s298 = scalar_select %p295, %s296, %s297
      %p301 = pneg %p295
      %p302 = scmp.eq.s32.totalorder %s26, 1
      %p303 = por %p301, %p302
      %p304 = scmp.ne.s32.totalorder %s296, %s299
      %p305 = scmp.eq.s32.totalorder %s26, 0
      %p306 = por %p304, %p305
      %p307 = scmp.ne.s32.totalorder %s296, %s299
      %p308 = scmp.eq.s32.totalorder %s31, 1
      %p309 = por %p307, %p308
      %p310 = scmp.ne.s32.totalorder %s299, %s300
      %p311 = scmp.eq.s32.totalorder %s31, 0
      %p312 = por %p310, %p311
      %p313 = scmp.ne.s32.totalorder %s299, %s300
      %p314 = scmp.eq.s32.totalorder %s32, 1
      %p315 = por %p313, %p314
      %p317 = scmp.ne.s32.totalorder %s300, %s316
      %p318 = scmp.eq.s32.totalorder %s32, 0
      %p319 = por %p317, %p318
      %s320 = ssub.s32 %s26, %s33
      %p321 = scmp.eq.s32.totalorder %s320, 0
      %s323 = sadd.s32 %s322, 1
      %s324 = scalar_select %p321, %s322, %s323
      %p327 = pneg %p321
      %p328 = scmp.eq.s32.totalorder %s26, 1
      %p329 = por %p327, %p328
      %p330 = scmp.ne.s32.totalorder %s322, %s325
      %p331 = scmp.eq.s32.totalorder %s26, 0
      %p332 = por %p330, %p331
      %p333 = scmp.ne.s32.totalorder %s322, %s325
      %p334 = scmp.eq.s32.totalorder %s31, 1
      %p335 = por %p333, %p334
      %p336 = scmp.ne.s32.totalorder %s325, %s326
      %p337 = scmp.eq.s32.totalorder %s31, 0
      %p338 = por %p336, %p337
      %p339 = scmp.ne.s32.totalorder %s325, %s326
      %p340 = scmp.eq.s32.totalorder %s32, 1
      %p341 = por %p339, %p340
      %p343 = scmp.ne.s32.totalorder %s326, %s342
      %p344 = scmp.eq.s32.totalorder %s32, 0
      %p345 = por %p343, %p344
      %s346 = ssub.s32 %s26, %s33
      %p347 = scmp.eq.s32.totalorder %s346, 0
      %s349 = sadd.s32 %s348, 1
      %s350 = scalar_select %p347, %s348, %s349
      %p353 = pneg %p347
      %p354 = scmp.eq.s32.totalorder %s26, 1
      %p355 = por %p353, %p354
      %p356 = scmp.ne.s32.totalorder %s348, %s351
      %p357 = scmp.eq.s32.totalorder %s26, 0
      %p358 = por %p356, %p357
      %p359 = scmp.ne.s32.totalorder %s348, %s351
      %p360 = scmp.eq.s32.totalorder %s31, 1
      %p361 = por %p359, %p360
      %p362 = scmp.ne.s32.totalorder %s351, %s352
      %p363 = scmp.eq.s32.totalorder %s31, 0
      %p364 = por %p362, %p363
      %p365 = scmp.ne.s32.totalorder %s351, %s352
      %p366 = scmp.eq.s32.totalorder %s32, 1
      %p367 = por %p365, %p366
      %p369 = scmp.ne.s32.totalorder %s352, %s368
      %p370 = scmp.eq.s32.totalorder %s32, 0
      %p371 = por %p369, %p370
      %s372 = ssub.s32 %s26, %s33
      %p373 = scmp.eq.s32.totalorder %s372, 0
      %s375 = sadd.s32 %s374, 1
      %s376 = scalar_select %p373, %s374, %s375
      %p379 = pneg %p373
      %p380 = scmp.eq.s32.totalorder %s26, 1
      %p381 = por %p379, %p380
      %p382 = scmp.ne.s32.totalorder %s374, %s377
      %p383 = scmp.eq.s32.totalorder %s26, 0
      %p384 = por %p382, %p383
      %p385 = scmp.ne.s32.totalorder %s374, %s377
      %p386 = scmp.eq.s32.totalorder %s31, 1
      %p387 = por %p385, %p386
      %p388 = scmp.ne.s32.totalorder %s377, %s378
      %p389 = scmp.eq.s32.totalorder %s31, 0
      %p390 = por %p388, %p389
      %p391 = scmp.ne.s32.totalorder %s377, %s378
      %p392 = scmp.eq.s32.totalorder %s32, 1
      %p393 = por %p391, %p392
      %p395 = scmp.ne.s32.totalorder %s378, %s394
      %p396 = scmp.eq.s32.totalorder %s32, 0
      %p397 = por %p395, %p396
      %s398 = ssub.s32 %s26, %s33
      %p399 = scmp.eq.s32.totalorder %s398, 0
      %s401 = sadd.s32 %s400, 1
      %s402 = scalar_select %p399, %s400, %s401
      %p405 = pneg %p399
      %p406 = scmp.eq.s32.totalorder %s26, 1
      %p407 = por %p405, %p406
      %p408 = scmp.ne.s32.totalorder %s400, %s403
      %p409 = scmp.eq.s32.totalorder %s26, 0
      %p410 = por %p408, %p409
      %p411 = scmp.ne.s32.totalorder %s400, %s403
      %p412 = scmp.eq.s32.totalorder %s31, 1
      %p413 = por %p411, %p412
      %p414 = scmp.ne.s32.totalorder %s403, %s404
      %p415 = scmp.eq.s32.totalorder %s31, 0
      %p416 = por %p414, %p415
      %p417 = scmp.ne.s32.totalorder %s403, %s404
      %p418 = scmp.eq.s32.totalorder %s32, 1
      %p419 = por %p417, %p418
      %p421 = scmp.ne.s32.totalorder %s404, %s420
      %p422 = scmp.eq.s32.totalorder %s32, 0
      %p423 = por %p421, %p422
      %s424 = ssub.s32 %s26, %s33
      %p425 = scmp.eq.s32.totalorder %s424, 0
      %s427 = sadd.s32 %s426, 1
      %s428 = scalar_select %p425, %s426, %s427
      %p431 = pneg %p425
      %p432 = scmp.eq.s32.totalorder %s26, 1
      %p433 = por %p431, %p432
      %p434 = scmp.ne.s32.totalorder %s426, %s429
      %p435 = scmp.eq.s32.totalorder %s26, 0
      %p436 = por %p434, %p435
      %p437 = scmp.ne.s32.totalorder %s426, %s429
      %p438 = scmp.eq.s32.totalorder %s31, 1
      %p439 = por %p437, %p438
      %p440 = scmp.ne.s32.totalorder %s429, %s430
      %p441 = scmp.eq.s32.totalorder %s31, 0
      %p442 = por %p440, %p441
      %p443 = scmp.ne.s32.totalorder %s429, %s430
      %p444 = scmp.eq.s32.totalorder %s32, 1
      %p445 = por %p443, %p444
      %p447 = scmp.ne.s32.totalorder %s430, %s446
      %p448 = scmp.eq.s32.totalorder %s32, 0
      %p449 = por %p447, %p448
      %s451 = sadd.s32 %s450, 1
      %p454 = scmp.eq.s32.totalorder %s26, 1
      %p455 = scmp.ne.s32.totalorder %s450, %s452
      %p456 = scmp.eq.s32.totalorder %s26, 0
      %p457 = por %p455, %p456
      %p458 = scmp.ne.s32.totalorder %s450, %s452
      %p459 = scmp.eq.s32.totalorder %s31, 1
      %p460 = por %p458, %p459
      %p461 = scmp.ne.s32.totalorder %s452, %s453
      %p462 = scmp.eq.s32.totalorder %s31, 0
      %p463 = por %p461, %p462
      %p464 = scmp.ne.s32.totalorder %s452, %s453
      %p465 = scmp.eq.s32.totalorder %s32, 1
      %p466 = por %p464, %p465
      %p468 = scmp.ne.s32.totalorder %s453, %s467
      %p469 = scmp.eq.s32.totalorder %s32, 0
      %p470 = por %p468, %p469
      %s472 = sadd.s32 %s471, 1
      %p475 = scmp.eq.s32.totalorder %s26, 1
      %p476 = scmp.ne.s32.totalorder %s471, %s473
      %p477 = scmp.eq.s32.totalorder %s26, 0
      %p478 = por %p476, %p477
      %p479 = scmp.ne.s32.totalorder %s471, %s473
      %p480 = scmp.eq.s32.totalorder %s31, 1
      %p481 = por %p479, %p480
      %p482 = scmp.ne.s32.totalorder %s473, %s474
      %p483 = scmp.eq.s32.totalorder %s31, 0
      %p484 = por %p482, %p483
      %p485 = scmp.ne.s32.totalorder %s473, %s474
      %p486 = scmp.eq.s32.totalorder %s32, 1
      %p487 = por %p485, %p486
      %p489 = scmp.ne.s32.totalorder %s474, %s488
      %p490 = scmp.eq.s32.totalorder %s32, 0
      %p491 = por %p489, %p490
      %s493 = sadd.s32 %s492, 1
      %p496 = scmp.eq.s32.totalorder %s26, 1
      %p497 = scmp.ne.s32.totalorder %s492, %s494
      %p498 = scmp.eq.s32.totalorder %s26, 0
      %p499 = por %p497, %p498
      %p500 = scmp.ne.s32.totalorder %s492, %s494
      %p501 = scmp.eq.s32.totalorder %s31, 1
      %p502 = por %p500, %p501
      %p503 = scmp.ne.s32.totalorder %s494, %s495
      %p504 = scmp.eq.s32.totalorder %s31, 0
      %p505 = por %p503, %p504
      %p506 = scmp.ne.s32.totalorder %s494, %s495
      %p507 = scmp.eq.s32.totalorder %s32, 1
      %p508 = por %p506, %p507
      %p510 = scmp.ne.s32.totalorder %s495, %s509
      %p511 = scmp.eq.s32.totalorder %s32, 0
      %p512 = por %p510, %p511
      %p513 = scmp.le.s32.totalorder 1, %s26
      %p514 = scmp.lt.s32.totalorder %s26, 3
      %p515 = pnand %p513, %p514
      %p516 = pneg %p515
      // Predicated region
      $region9: #{tpu_custom_call.1} parent=5 // pred_check
        _
      $region10: #{tpu_custom_call.1} parent=5 // pred_check_branch
        %518 = sbr.rel (%p515) target = $region12
      $region11: #{tpu_custom_call.1} parent=5 // pred_region
        %s519 = ssub.s32 %s26, 1
        // Predicated region
        $region13: #{tpu_custom_call.1} parent=11 // pred_check
          %p520 = pneg %p463
        $region14: #{tpu_custom_call.1} parent=11 // pred_check_branch
          %522 = sbr.rel (%p520) target = $region16
        $region15: #{tpu_custom_call.1} parent=11 // pred_region
          _
        $region16: #{tpu_custom_call.1} parent=11 // pred_fallthru
          _
        // Predicated region
        $region17: #{tpu_custom_call.1} parent=11 // pred_check
          %p523 = pneg %p484
        $region18: #{tpu_custom_call.1} parent=11 // pred_check_branch
          %525 = sbr.rel (%p523) target = $region20
        $region19: #{tpu_custom_call.1} parent=11 // pred_region
          _
        $region20: #{tpu_custom_call.1} parent=11 // pred_fallthru
          _
      $region12: #{tpu_custom_call.1} parent=5 // pred_fallthru
        _
      %p526 = scmp.lt.s32.totalorder %s26, 2
      // Predicated region
      $region21: #{tpu_custom_call.1} parent=5 // pred_check
        %p527 = pneg %p526
      $region22: #{tpu_custom_call.1} parent=5 // pred_check_branch
        %529 = sbr.rel (%p527) target = $region24
      $region23: #{tpu_custom_call.1} parent=5 // pred_region
        // Predicated region
        $region25: #{tpu_custom_call.1} parent=23 // pred_check
          %p530 = pneg %p46
        $region26: #{tpu_custom_call.1} parent=23 // pred_check_branch
          %532 = sbr.rel (%p530) target = $region28
        $region27: #{tpu_custom_call.1} parent=23 // pred_region
          %p533 = scmp.lt.s32.totalorder %s26, 1
          %s534 = scalar_select %p533, %s26, 1
          %s535 = scalar_lea.vmem %s1, %s534
        $region28: #{tpu_custom_call.1} parent=23 // pred_fallthru
          _
        // Predicated region
        $region29: #{tpu_custom_call.1} parent=23 // pred_check
          %p536 = pneg %p72
        $region30: #{tpu_custom_call.1} parent=23 // pred_check_branch
          %538 = sbr.rel (%p536) target = $region32
        $region31: #{tpu_custom_call.1} parent=23 // pred_region
          %p539 = scmp.lt.s32.totalorder %s26, 1
          %s540 = scalar_select %p539, %s26, 1
          %s541 = scalar_lea.vmem %s2, %s540
        $region32: #{tpu_custom_call.1} parent=23 // pred_fallthru
          _
        // Predicated region
        $region33: #{tpu_custom_call.1} parent=23 // pred_check
          %p542 = pneg %p98
        $region34: #{tpu_custom_call.1} parent=23 // pred_check_branch
          %544 = sbr.rel (%p542) target = $region36
        $region35: #{tpu_custom_call.1} parent=23 // pred_region
          %p545 = scmp.lt.s32.totalorder %s26, 1
          %s546 = scalar_select %p545, %s26, 1
          %s547 = smul.addr %s546, 4
          %s548 = smul.addr %s547, 4
          %s549 = scalar_lea.vmem %s3, %s548
        $region36: #{tpu_custom_call.1} parent=23 // pred_fallthru
          _
        // Predicated region
        $region37: #{tpu_custom_call.1} parent=23 // pred_check
          %p550 = pneg %p124
        $region38: #{tpu_custom_call.1} parent=23 // pred_check_branch
          %552 = sbr.rel (%p550) target = $region40
        $region39: #{tpu_custom_call.1} parent=23 // pred_region
          %p553 = scmp.lt.s32.totalorder %s26, 1
          %s554 = scalar_select %p553, %s26, 1
          %s555 = scalar_lea.vmem %s4, %s554
        $region40: #{tpu_custom_call.1} parent=23 // pred_fallthru
          _
        // Predicated region
        $region41: #{tpu_custom_call.1} parent=23 // pred_check
          %p556 = pneg %p150
        $region42: #{tpu_custom_call.1} parent=23 // pred_check_branch
          %558 = sbr.rel (%p556) target = $region44
        $region43: #{tpu_custom_call.1} parent=23 // pred_region
          %p559 = scmp.lt.s32.totalorder %s26, 1
          %s560 = scalar_select %p559, %s26, 1
          %s561 = smul.addr %s560, 4
          %s562 = smul.addr %s561, 4
          %s563 = scalar_lea.vmem %s5, %s562
        $region44: #{tpu_custom_call.1} parent=23 // pred_fallthru
          _
        // Predicated region
        $region45: #{tpu_custom_call.1} parent=23 // pred_check
          %p564 = pneg %p176
        $region46: #{tpu_custom_call.1} parent=23 // pred_check_branch
          %566 = sbr.rel (%p564) target = $region48
        $region47: #{tpu_custom_call.1} parent=23 // pred_region
          %p567 = scmp.lt.s32.totalorder %s26, 1
          %s568 = scalar_select %p567, %s26, 1
          %s569 = scalar_lea.vmem %s6, %s568
        $region48: #{tpu_custom_call.1} parent=23 // pred_fallthru
          _
        // Predicated region
        $region49: #{tpu_custom_call.1} parent=23 // pred_check
          %p570 = pneg %p202
        $region50: #{tpu_custom_call.1} parent=23 // pred_check_branch
          %572 = sbr.rel (%p570) target = $region52
        $region51: #{tpu_custom_call.1} parent=23 // pred_region
          %p573 = scmp.lt.s32.totalorder %s26, 1
          %s574 = scalar_select %p573, %s26, 1
          %s575 = smul.addr %s574, 4
          %s576 = smul.addr %s575, 4
          %s577 = scalar_lea.vmem %s7, %s576
        $region52: #{tpu_custom_call.1} parent=23 // pred_fallthru
          _
        // Predicated region
        $region53: #{tpu_custom_call.1} parent=23 // pred_check
          %p578 = pneg %p228
        $region54: #{tpu_custom_call.1} parent=23 // pred_check_branch
          %580 = sbr.rel (%p578) target = $region56
        $region55: #{tpu_custom_call.1} parent=23 // pred_region
          %p581 = scmp.lt.s32.totalorder %s26, 1
          %s582 = scalar_select %p581, %s26, 1
          %s583 = scalar_lea.vmem %s8, %s582
        $region56: #{tpu_custom_call.1} parent=23 // pred_fallthru
          _
        // Predicated region
        $region57: #{tpu_custom_call.1} parent=23 // pred_check
          %p584 = pneg %p254
        $region58: #{tpu_custom_call.1} parent=23 // pred_check_branch
          %586 = sbr.rel (%p584) target = $region60
        $region59: #{tpu_custom_call.1} parent=23 // pred_region
          %p587 = scmp.lt.s32.totalorder %s26, 1
          %s588 = scalar_select %p587, %s26, 1
          %s589 = smul.addr %s588, 4
          %s590 = smul.addr %s589, 4
          %s591 = scalar_lea.vmem %s9, %s590
        $region60: #{tpu_custom_call.1} parent=23 // pred_fallthru
          _
        // Predicated region
        $region61: #{tpu_custom_call.1} parent=23 // pred_check
          %p592 = pneg %p280
        $region62: #{tpu_custom_call.1} parent=23 // pred_check_branch
          %594 = sbr.rel (%p592) target = $region64
        $region63: #{tpu_custom_call.1} parent=23 // pred_region
          %p595 = scmp.lt.s32.totalorder %s26, 1
          %s596 = scalar_select %p595, %s26, 1
          %s597 = scalar_lea.vmem %s10, %s596
        $region64: #{tpu_custom_call.1} parent=23 // pred_fallthru
          _
        // Predicated region
        $region65: #{tpu_custom_call.1} parent=23 // pred_check
          %p598 = pneg %p306
        $region66: #{tpu_custom_call.1} parent=23 // pred_check_branch
          %600 = sbr.rel (%p598) target = $region68
        $region67: #{tpu_custom_call.1} parent=23 // pred_region
          %p601 = scmp.lt.s32.totalorder %s26, 1
          %s602 = scalar_select %p601, %s26, 1
          %s603 = scalar_lea.vmem %s11, %s602
        $region68: #{tpu_custom_call.1} parent=23 // pred_fallthru
          _
        // Predicated region
        $region69: #{tpu_custom_call.1} parent=23 // pred_check
          %p604 = pneg %p332
        $region70: #{tpu_custom_call.1} parent=23 // pred_check_branch
          %606 = sbr.rel (%p604) target = $region72
        $region71: #{tpu_custom_call.1} parent=23 // pred_region
          %p607 = scmp.lt.s32.totalorder %s26, 1
          %s608 = scalar_select %p607, %s26, 1
          %s609 = scalar_lea.vmem %s12, %s608
        $region72: #{tpu_custom_call.1} parent=23 // pred_fallthru
          _
        // Predicated region
        $region73: #{tpu_custom_call.1} parent=23 // pred_check
          %p610 = pneg %p358
        $region74: #{tpu_custom_call.1} parent=23 // pred_check_branch
          %612 = sbr.rel (%p610) target = $region76
        $region75: #{tpu_custom_call.1} parent=23 // pred_region
          %p613 = scmp.lt.s32.totalorder %s26, 1
          %s614 = scalar_select %p613, %s26, 1
          %s615 = smul.addr %s614, 4
          %s616 = smul.addr %s615, 4
          %s617 = scalar_lea.vmem %s13, %s616
        $region76: #{tpu_custom_call.1} parent=23 // pred_fallthru
          _
        // Predicated region
        $region77: #{tpu_custom_call.1} parent=23 // pred_check
          %p618 = pneg %p384
        $region78: #{tpu_custom_call.1} parent=23 // pred_check_branch
          %620 = sbr.rel (%p618) target = $region80
        $region79: #{tpu_custom_call.1} parent=23 // pred_region
          %p621 = scmp.lt.s32.totalorder %s26, 1
          %s622 = scalar_select %p621, %s26, 1
          %s623 = scalar_lea.vmem %s14, %s622
        $region80: #{tpu_custom_call.1} parent=23 // pred_fallthru
          _
        // Predicated region
        $region81: #{tpu_custom_call.1} parent=23 // pred_check
          %p624 = pneg %p410
        $region82: #{tpu_custom_call.1} parent=23 // pred_check_branch
          %626 = sbr.rel (%p624) target = $region84
        $region83: #{tpu_custom_call.1} parent=23 // pred_region
          %p627 = scmp.lt.s32.totalorder %s26, 1
          %s628 = scalar_select %p627, %s26, 1
          %s629 = smul.addr %s628, 16
          %s630 = smul.addr %s629, 4
          %s631 = scalar_lea.vmem %s15, %s630
        $region84: #{tpu_custom_call.1} parent=23 // pred_fallthru
          _
        // Predicated region
        $region85: #{tpu_custom_call.1} parent=23 // pred_check
          %p632 = pneg %p436
        $region86: #{tpu_custom_call.1} parent=23 // pred_check_branch
          %634 = sbr.rel (%p632) target = $region88
        $region87: #{tpu_custom_call.1} parent=23 // pred_region
          %p635 = scmp.lt.s32.totalorder %s26, 1
          %s636 = scalar_select %p635, %s26, 1
          %s637 = scalar_lea.vmem %s16, %s636
        $region88: #{tpu_custom_call.1} parent=23 // pred_fallthru
          _
      $region24: #{tpu_custom_call.1} parent=5 // pred_fallthru
        _
      %p638 = scmp.le.s32.totalorder 1, %s26
      %p639 = scmp.lt.s32.totalorder %s26, 3
      %p640 = pnand %p638, %p639
      %p641 = pneg %p640
      // Predicated region
      $region89: #{tpu_custom_call.1} parent=5 // pred_check
        _
      $region90: #{tpu_custom_call.1} parent=5 // pred_check_branch
        %643 = sbr.rel (%p640) target = $region92
      $region91: #{tpu_custom_call.1} parent=5 // pred_region
        %s644 = ssub.s32 %s26, 1
        %p645 = scmp.lt.s32.totalorder %s31, 1
        %s646 = scalar_select %p645, %s31, 1
        %s647 = scalar_lea.vmem %s1, %s646
        %p648 = pneg %p52
        %p649 = pneg %p49
        %p650 = scmp.lt.s32.totalorder %s31, 1
        %s651 = scalar_select %p650, %s31, 1
        %s652 = scalar_lea.vmem %s2, %s651
        %p653 = pneg %p78
        %p654 = pneg %p75
        %p655 = scmp.lt.s32.totalorder %s31, 1
        %s656 = scalar_select %p655, %s31, 1
        %s657 = smul.addr %s656, 4
        %s658 = smul.addr %s657, 4
        %s659 = scalar_lea.vmem %s3, %s658
        %p660 = pneg %p104
        %p661 = pneg %p101
        %p662 = scmp.lt.s32.totalorder %s31, 1
        %s663 = scalar_select %p662, %s31, 1
        %s664 = scalar_lea.vmem %s4, %s663
        %p665 = pneg %p130
        %p666 = pneg %p127
        %p667 = scmp.lt.s32.totalorder %s31, 1
        %s668 = scalar_select %p667, %s31, 1
        %s669 = smul.addr %s668, 4
        %s670 = smul.addr %s669, 4
        %s671 = scalar_lea.vmem %s5, %s670
        %p672 = pneg %p156
        %p673 = pneg %p153
        %p674 = scmp.lt.s32.totalorder %s31, 1
        %s675 = scalar_select %p674, %s31, 1
        %s676 = scalar_lea.vmem %s6, %s675
        %p677 = pneg %p182
        %p678 = pneg %p179
        %p679 = scmp.lt.s32.totalorder %s31, 1
        %s680 = scalar_select %p679, %s31, 1
        %s681 = smul.addr %s680, 4
        %s682 = smul.addr %s681, 4
        %s683 = scalar_lea.vmem %s7, %s682
        %p684 = pneg %p208
        %p685 = pneg %p205
        %p686 = scmp.lt.s32.totalorder %s31, 1
        %s687 = scalar_select %p686, %s31, 1
        %s688 = scalar_lea.vmem %s8, %s687
        %p689 = pneg %p234
        %p690 = pneg %p231
        %p691 = scmp.lt.s32.totalorder %s31, 1
        %s692 = scalar_select %p691, %s31, 1
        %s693 = smul.addr %s692, 4
        %s694 = smul.addr %s693, 4
        %s695 = scalar_lea.vmem %s9, %s694
        %p696 = pneg %p260
        %p697 = pneg %p257
        %p698 = scmp.lt.s32.totalorder %s31, 1
        %s699 = scalar_select %p698, %s31, 1
        %s700 = scalar_lea.vmem %s10, %s699
        %p701 = pneg %p286
        %p702 = pneg %p283
        %p703 = scmp.lt.s32.totalorder %s31, 1
        %s704 = scalar_select %p703, %s31, 1
        %s705 = scalar_lea.vmem %s11, %s704
        %p706 = pneg %p312
        %p707 = pneg %p309
        %p708 = scmp.lt.s32.totalorder %s31, 1
        %s709 = scalar_select %p708, %s31, 1
        %s710 = scalar_lea.vmem %s12, %s709
        %p711 = pneg %p338
        %p712 = pneg %p335
        %p713 = scmp.lt.s32.totalorder %s31, 1
        %s714 = scalar_select %p713, %s31, 1
        %s715 = smul.addr %s714, 4
        %s716 = smul.addr %s715, 4
        %s717 = scalar_lea.vmem %s13, %s716
        %p718 = pneg %p364
        %p719 = pneg %p361
        %p720 = scmp.lt.s32.totalorder %s31, 1
        %s721 = scalar_select %p720, %s31, 1
        %s722 = scalar_lea.vmem %s14, %s721
        %p723 = pneg %p390
        %p724 = pneg %p387
        %p725 = scmp.lt.s32.totalorder %s31, 1
        %s726 = scalar_select %p725, %s31, 1
        %s727 = smul.addr %s726, 16
        %s728 = smul.addr %s727, 4
        %s729 = scalar_lea.vmem %s15, %s728
        %p730 = pneg %p416
        %p731 = pneg %p413
        %p732 = scmp.lt.s32.totalorder %s31, 1
        %s733 = scalar_select %p732, %s31, 1
        %s734 = scalar_lea.vmem %s16, %s733
        %p735 = pneg %p442
        %p736 = pneg %p439
        %p737 = pneg %p463
        %p738 = pneg %p460
        %p739 = pneg %p484
        %p740 = pneg %p481
        %p741 = pneg %p505
        %p742 = pneg %p502
        %p743 = scmp.lt.s32.totalorder %s31, 1
        %s744 = scalar_select %p743, %s31, 1
        %s745 = scalar_lea.vmem %s1, %s744
        %p746 = scmp.lt.s32.totalorder %s31, 1
        %s747 = scalar_select %p746, %s31, 1
        %s748 = scalar_lea.vmem %s2, %s747
        %p749 = scmp.lt.s32.totalorder %s31, 1
        %s750 = scalar_select %p749, %s31, 1
        %s751 = smul.addr %s750, 4
        %s752 = smul.addr %s751, 4
        %s753 = scalar_lea.vmem %s3, %s752
        %p754 = scmp.lt.s32.totalorder %s31, 1
        %s755 = scalar_select %p754, %s31, 1
        %s756 = scalar_lea.vmem %s4, %s755
        %p757 = scmp.lt.s32.totalorder %s31, 1
        %s758 = scalar_select %p757, %s31, 1
        %s759 = smul.addr %s758, 4
        %s760 = smul.addr %s759, 4
        %s761 = scalar_lea.vmem %s5, %s760
        %p762 = scmp.lt.s32.totalorder %s31, 1
        %s763 = scalar_select %p762, %s31, 1
        %s764 = scalar_lea.vmem %s6, %s763
        %p765 = scmp.lt.s32.totalorder %s31, 1
        %s766 = scalar_select %p765, %s31, 1
        %s767 = smul.addr %s766, 4
        %s768 = smul.addr %s767, 4
        %s769 = scalar_lea.vmem %s7, %s768
        %p770 = scmp.lt.s32.totalorder %s31, 1
        %s771 = scalar_select %p770, %s31, 1
        %s772 = scalar_lea.vmem %s8, %s771
        %p773 = scmp.lt.s32.totalorder %s31, 1
        %s774 = scalar_select %p773, %s31, 1
        %s775 = smul.addr %s774, 4
        %s776 = smul.addr %s775, 4
        %s777 = scalar_lea.vmem %s9, %s776
        %p778 = scmp.lt.s32.totalorder %s31, 1
        %s779 = scalar_select %p778, %s31, 1
        %s780 = scalar_lea.vmem %s10, %s779
        %p781 = scmp.lt.s32.totalorder %s31, 1
        %s782 = scalar_select %p781, %s31, 1
        %s783 = scalar_lea.vmem %s11, %s782
        %p784 = scmp.lt.s32.totalorder %s31, 1
        %s785 = scalar_select %p784, %s31, 1
        %s786 = scalar_lea.vmem %s12, %s785
        %p787 = scmp.lt.s32.totalorder %s31, 1
        %s788 = scalar_select %p787, %s31, 1
        %s789 = smul.addr %s788, 4
        %s790 = smul.addr %s789, 4
        %s791 = scalar_lea.vmem %s13, %s790
        %p792 = scmp.lt.s32.totalorder %s31, 1
        %s793 = scalar_select %p792, %s31, 1
        %s794 = scalar_lea.vmem %s14, %s793
        %p795 = scmp.lt.s32.totalorder %s31, 1
        %s796 = scalar_select %p795, %s31, 1
        %s797 = smul.addr %s796, 16
        %s798 = smul.addr %s797, 4
        %s799 = scalar_lea.vmem %s15, %s798
        %p800 = scmp.lt.s32.totalorder %s31, 1
        %s801 = scalar_select %p800, %s31, 1
        %s802 = scalar_lea.vmem %s16, %s801
        %p804 = scmp.eq.s32.totalorder %s31, 0
        // Predicated region
        $region93: #{tpu_custom_call.1} parent=91 // pred_check
          %p805 = pneg %p804
        $region94: #{tpu_custom_call.1} parent=91 // pred_check_branch
          %807 = sbr.rel (%p805) target = $region96
        $region95: #{tpu_custom_call.1} parent=91 // pred_region
          $region97: #{tpu_custom_call.1} parent=95
            #allocation6 [shape = 's32[1]{0}', space=sflag, size = 0x4, scoped, tag = 'scoped memory for tpu_custom_call.1']
            // Predicated region
            $region98: #{tpu_custom_call.1} parent=97 // pred_check
              _
            $region99: #{tpu_custom_call.1} parent=97 // pred_check_branch
              %809 = sbr.rel target = $region101
            $region100: #{tpu_custom_call.1} parent=97 // pred_region
              %810 = sst [smem:[#allocation9]] [#allocation8]
              %811 = sst [smem:[#allocation10]] [#allocation7]
            $region101: #{tpu_custom_call.1} parent=97 // pred_fallthru
              _
            %813 = shalt.err (0)
            %s815 = sshll.u32 [#allocation2], 4
            %s816 = int_to_ptr.vmem [resolvable:$true] %s815
            %818 = dma.hbm_to_vmem [thread:$0]  %s0, 256, %s816, [#allocation6]
            %s819 = smul.u32 2, 8
            %s820 = smul.u32 %s819, 1
            %s821 = sshll.u32 %s820, 4
            %822 = dma.done [#allocation6], %s821
        $region96: #{tpu_custom_call.1} parent=91 // pred_fallthru
          _
        %v823 = vld [vmem:[#allocation2] sm:$0xff]
        %v824 = vld [vmem:[#allocation2 + $0x8] sm:$0xff]
        %v825 = vld [vmem:[%s745] sm:$0x1]
        %v826 = vld [vmem:[%s748] sm:$0x1]
        %vm827 = vcmask 261120
        %v828 = vsel %vm827, %v823, 0.0
        %829 = vadd.xlane.f32.xlu0 %v828
        %v830 = vpop.xlane.xlu0 %829
        %v831 = vsel %vm827, %v824, 0.0
        %832 = vadd.xlane.f32.xlu0 %v831
        %v833 = vpop.xlane.xlu0 %832
        %v834 = vrcp.pop 32.0
        %v835 = vmul.f32 %v830, %v834
        %v836 = vmul.f32 %v833, %v834
        %v837 = vsub.f32 %v823, %v835
        %v838 = vsub.f32 %v824, %v836
        %v839 = vmul.f32 %v837, %v837
        %v840 = vmul.f32 %v838, %v838
        %v841 = vsel %vm827, %v839, 0.0
        %842 = vadd.xlane.f32.xlu0 %v841
        %v843 = vpop.xlane.xlu0 %842
        %v844 = vsel %vm827, %v840, 0.0
        %845 = vadd.xlane.f32.xlu0 %v844
        %v846 = vpop.xlane.xlu0 %845
        %v847 = vmul.f32 %v843, %v834
        %v848 = vmul.f32 %v846, %v834
        %v849 = vadd.f32 %v847, 1e-05
        %v850 = vadd.f32 %v848, 1e-05
        %v851 = vrsqrt.pop %v849
        %v852 = vrsqrt.pop %v850
        %v853 = vmul.f32 %v837, %v851
        %v854 = vmul.f32 %v838, %v852
        %v856 = vlaneseq
        %v857 = vshrl.u32 %v856, 7
        %v858 = vsub.s32 0, %v857
        %v859 = vrot.slane %v825, %v858
        %v861 = vmul.f32 %v853, %v859
        %v862 = vmul.f32 %v854, %v859
        %v864 = vlaneseq
        %v865 = vshrl.u32 %v864, 7
        %v866 = vsub.s32 0, %v865
        %v867 = vrot.slane %v826, %v866
        %v869 = vadd.f32 %v861, %v867
        %v870 = vadd.f32 %v862, %v867
        %v871 = vpack.c.bf16 %v870, %v869
        %v872 = vld [vmem:[%s753] sm:$0xf]
        %v873 = vld [vmem:[%s753 + $0x4] sm:$0xf]
        %v874 = vld [vmem:[%s753 + $0x8] sm:$0xf]
        %v875 = vld [vmem:[%s753 + $0xc] sm:$0xf]
        %v876 = vld [vmem:[%s756] sm:$0x1]
        %v878 = vlaneseq
        %v879 = vshrl.u32 %v878, 7
        %v880 = vsub.s32 0, %v879
        %v881 = vrot.slane %v876, %v880
        %v887 = vunpack.c.l.b16 %v872
        %v888 = vunpack.c.l.b16 %v873
        %v889 = vunpack.c.l.b16 %v874
        %v890 = vunpack.c.l.b16 %v875
        %v891 = vpack.c.b16 %v888, %v887
        %v892 = vpack.c.b16 %v890, %v889
        %v896 = vsel %vm827, %v871, 0
        %898 = vmatprep.subr.bf16.mxu0 0
        %899 = vmatpush1.bf16.msra.mxu0 %v891
        %900 = vmatprep.subr.bf16.mxu0 0
        %901 = vmatpush1.bf16.msra.mxu0 %v892
        %902 = vmatprep.subr.bf16.mxu0 0
        %903 = vmatpush1.bf16.msra.mxu0 0
        %904 = vmatprep.subr.bf16.mxu0 0
        %905 = vmatpush1.bf16.msra.mxu0 0
        %906 = vmatprep.subr.bf16.mxu0 0
        %907 = vmatpush1.bf16.msra.mxu0 0
        %908 = vmatprep.subr.bf16.mxu0 0
        %909 = vmatpush1.bf16.msra.mxu0 0
        %910 = vmatprep.subr.bf16.mxu0 0
        %911 = vmatpush1.bf16.msra.mxu0 0
        %912 = vmatprep.subr.bf16.mxu0 0
        %913 = vmatpush1.bf16.msra.mxu0 0
        %914 = vmatprep.subr.bf16.mxu0 0
        %915 = vmatpush1.bf16.msra.mxu0 0
        %916 = vmatprep.subr.bf16.mxu0 0
        %917 = vmatpush1.bf16.msra.mxu0 0
        %918 = vmatprep.subr.bf16.mxu0 0
        %919 = vmatpush1.bf16.msra.mxu0 0
        %920 = vmatprep.subr.bf16.mxu0 0
        %921 = vmatpush1.bf16.msra.mxu0 0
        %922 = vmatprep.subr.bf16.mxu0 0
        %923 = vmatpush1.bf16.msra.mxu0 0
        %924 = vmatprep.subr.bf16.mxu0 0
        %925 = vmatpush1.bf16.msra.mxu0 0
        %926 = vmatprep.subr.bf16.mxu0 0
        %927 = vmatpush1.bf16.msra.mxu0 0
        %928 = vmatprep.subr.bf16.mxu0 0
        %929 = vmatpush1.bf16.msra.mxu0 0
        %930 = vmatprep.mubr.bf16.mxu0 0
        %931 = vmatmul.mubr.bf16.gmra.mrb[0].mxu0 %v896
        %v932 = vpop.f32.mrb[0].mxu0
        %v933 = vadd.f32 %v881, %v932
        %v934 = vpop.f32.mrb[0].mxu0
        %v935 = vpop.f32.mrb[0].mxu0
        %v936 = vadd.f32 %v881, %v935
        %v937 = vpop.f32.mrb[0].mxu0
        %938 = vdwg.mxu0
        %v939 = vld [vmem:[%s761] sm:$0xf]
        %v940 = vld [vmem:[%s761 + $0x4] sm:$0xf]
        %v941 = vld [vmem:[%s761 + $0x8] sm:$0xf]
        %v942 = vld [vmem:[%s761 + $0xc] sm:$0xf]
        %v943 = vld [vmem:[%s764] sm:$0x1]
        %v945 = vlaneseq
        %v946 = vshrl.u32 %v945, 7
        %v947 = vsub.s32 0, %v946
        %v948 = vrot.slane %v943, %v947
        %v954 = vunpack.c.l.b16 %v939
        %v955 = vunpack.c.l.b16 %v940
        %v956 = vunpack.c.l.b16 %v941
        %v957 = vunpack.c.l.b16 %v942
        %v958 = vpack.c.b16 %v955, %v954
        %v959 = vpack.c.b16 %v957, %v956
        %962 = vmatprep.subr.bf16.mxu0 0
        %963 = vmatpush1.bf16.msra.mxu0 %v958
        %964 = vmatprep.subr.bf16.mxu0 0
        %965 = vmatpush1.bf16.msra.mxu0 %v959
        %966 = vmatprep.subr.bf16.mxu0 0
        %967 = vmatpush1.bf16.msra.mxu0 0
        %968 = vmatprep.subr.bf16.mxu0 0
        %969 = vmatpush1.bf16.msra.mxu0 0
        %970 = vmatprep.subr.bf16.mxu0 0
        %971 = vmatpush1.bf16.msra.mxu0 0
        %972 = vmatprep.subr.bf16.mxu0 0
        %973 = vmatpush1.bf16.msra.mxu0 0
        %974 = vmatprep.subr.bf16.mxu0 0
        %975 = vmatpush1.bf16.msra.mxu0 0
        %976 = vmatprep.subr.bf16.mxu0 0
        %977 = vmatpush1.bf16.msra.mxu0 0
        %978 = vmatprep.subr.bf16.mxu0 0
        %979 = vmatpush1.bf16.msra.mxu0 0
        %980 = vmatprep.subr.bf16.mxu0 0
        %981 = vmatpush1.bf16.msra.mxu0 0
        %982 = vmatprep.subr.bf16.mxu0 0
        %983 = vmatpush1.bf16.msra.mxu0 0
        %984 = vmatprep.subr.bf16.mxu0 0
        %985 = vmatpush1.bf16.msra.mxu0 0
        %986 = vmatprep.subr.bf16.mxu0 0
        %987 = vmatpush1.bf16.msra.mxu0 0
        %988 = vmatprep.subr.bf16.mxu0 0
        %989 = vmatpush1.bf16.msra.mxu0 0
        %990 = vmatprep.subr.bf16.mxu0 0
        %991 = vmatpush1.bf16.msra.mxu0 0
        %992 = vmatprep.subr.bf16.mxu0 0
        %993 = vmatpush1.bf16.msra.mxu0 0
        %994 = vmatprep.mubr.bf16.mxu0 0
        %995 = vmatmul.mubr.bf16.gmra.mrb[0].mxu0 %v896
        %v996 = vpop.f32.mrb[0].mxu0
        %v997 = vadd.f32 %v948, %v996
        %v998 = vpop.f32.mrb[0].mxu0
        %v999 = vpop.f32.mrb[0].mxu0
        %v1000 = vadd.f32 %v948, %v999
        %v1001 = vpop.f32.mrb[0].mxu0
        %1002 = vdwg.mxu0
        %v1003 = vld [vmem:[%s769] sm:$0xf]
        %v1004 = vld [vmem:[%s769 + $0x4] sm:$0xf]
        %v1005 = vld [vmem:[%s769 + $0x8] sm:$0xf]
        %v1006 = vld [vmem:[%s769 + $0xc] sm:$0xf]
        %v1007 = vld [vmem:[%s772] sm:$0x1]
        %v1009 = vlaneseq
        %v1010 = vshrl.u32 %v1009, 7
        %v1011 = vsub.s32 0, %v1010
        %v1012 = vrot.slane %v1007, %v1011
        %v1018 = vunpack.c.l.b16 %v1003
        %v1019 = vunpack.c.l.b16 %v1004
        %v1020 = vunpack.c.l.b16 %v1005
        %v1021 = vunpack.c.l.b16 %v1006
        %v1022 = vpack.c.b16 %v1019, %v1018
        %v1023 = vpack.c.b16 %v1021, %v1020
        %1026 = vmatprep.subr.bf16.mxu0 0
        %1027 = vmatpush1.bf16.msra.mxu0 %v1022
        %1028 = vmatprep.subr.bf16.mxu0 0
        %1029 = vmatpush1.bf16.msra.mxu0 %v1023
        %1030 = vmatprep.subr.bf16.mxu0 0
        %1031 = vmatpush1.bf16.msra.mxu0 0
        %1032 = vmatprep.subr.bf16.mxu0 0
        %1033 = vmatpush1.bf16.msra.mxu0 0
        %1034 = vmatprep.subr.bf16.mxu0 0
        %1035 = vmatpush1.bf16.msra.mxu0 0
        %1036 = vmatprep.subr.bf16.mxu0 0
        %1037 = vmatpush1.bf16.msra.mxu0 0
        %1038 = vmatprep.subr.bf16.mxu0 0
        %1039 = vmatpush1.bf16.msra.mxu0 0
        %1040 = vmatprep.subr.bf16.mxu0 0
        %1041 = vmatpush1.bf16.msra.mxu0 0
        %1042 = vmatprep.subr.bf16.mxu0 0
        %1043 = vmatpush1.bf16.msra.mxu0 0
        %1044 = vmatprep.subr.bf16.mxu0 0
        %1045 = vmatpush1.bf16.msra.mxu0 0
        %1046 = vmatprep.subr.bf16.mxu0 0
        %1047 = vmatpush1.bf16.msra.mxu0 0
        %1048 = vmatprep.subr.bf16.mxu0 0
        %1049 = vmatpush1.bf16.msra.mxu0 0
        %1050 = vmatprep.subr.bf16.mxu0 0
        %1051 = vmatpush1.bf16.msra.mxu0 0
        %1052 = vmatprep.subr.bf16.mxu0 0
        %1053 = vmatpush1.bf16.msra.mxu0 0
        %1054 = vmatprep.subr.bf16.mxu0 0
        %1055 = vmatpush1.bf16.msra.mxu0 0
        %1056 = vmatprep.subr.bf16.mxu0 0
        %1057 = vmatpush1.bf16.msra.mxu0 0
        %1058 = vmatprep.mubr.bf16.mxu0 0
        %1059 = vmatmul.mubr.bf16.gmra.mrb[0].mxu0 %v896
        %v1060 = vpop.f32.mrb[0].mxu0
        %v1061 = vadd.f32 %v1012, %v1060
        %v1062 = vpop.f32.mrb[0].mxu0
        %v1063 = vpop.f32.mrb[0].mxu0
        %v1064 = vadd.f32 %v1012, %v1063
        %v1065 = vpop.f32.mrb[0].mxu0
        %1066 = vdwg.mxu0
        %v1067 = vmul.f32 %v933, 0.35355338
        %v1068 = vmul.f32 %v936, 0.35355338
        %v1069 = vpack.c.bf16 %v1068, %v1067
        %v1071 = vunpack.c.l.b16 %v1069
        %v1072 = vunpack.c.h.b16 %v1069
        %v1073 = vpack.c.b16 %v1071, %v1071
        %v1074 = vpack.c.b16 %v1072, %v1072
        %v1075 = vpack.c.bf16 %v1000, %v997
        %v1077 = vunpack.c.l.b16 %v1075
        %v1078 = vunpack.c.h.b16 %v1075
        %v1079 = vpack.c.b16 %v1077, %v1077
        %v1080 = vpack.c.b16 %v1078, %v1078
        %v1081 = vpack.c.bf16 %v1064, %v1061
        %v1083 = vunpack.c.l.b16 %v1081
        %v1084 = vunpack.c.h.b16 %v1081
        %v1085 = vpack.c.b16 %v1083, %v1083
        %v1086 = vpack.c.b16 %v1084, %v1084
        %vm1087 = vcmask 64512
        %v1089 = vsel %vm1087, %v1073, 0
        %v1092 = vsel %vm1087, %v1079, 0
        %1094 = vmatprep.subr.bf16.mxu0 0
        %1095 = vmatpush1.bf16.xpose.msra.mxu0 %v1092
        %1096 = vmatprep.subr.bf16.mxu0 0
        %1097 = vmatpush1.bf16.xpose.msra.mxu0 0
        %1098 = vmatprep.subr.bf16.mxu0 0
        %1099 = vmatpush1.bf16.xpose.msra.mxu0 0
        %1100 = vmatprep.subr.bf16.mxu0 0
        %1101 = vmatpush1.bf16.xpose.msra.mxu0 0
        %1102 = vmatprep.subr.bf16.mxu0 0
        %1103 = vmatpush1.bf16.xpose.msra.mxu0 0
        %1104 = vmatprep.subr.bf16.mxu0 0
        %1105 = vmatpush1.bf16.xpose.msra.mxu0 0
        %1106 = vmatprep.subr.bf16.mxu0 0
        %1107 = vmatpush1.bf16.xpose.msra.mxu0 0
        %1108 = vmatprep.subr.bf16.mxu0 0
        %1109 = vmatpush1.bf16.xpose.msra.mxu0 0
        %1110 = vmatprep.subr.bf16.mxu0 0
        %1111 = vmatpush1.bf16.xpose.msra.mxu0 0
        %1112 = vmatprep.subr.bf16.mxu0 0
        %1113 = vmatpush1.bf16.xpose.msra.mxu0 0
        %1114 = vmatprep.subr.bf16.mxu0 0
        %1115 = vmatpush1.bf16.xpose.msra.mxu0 0
        %1116 = vmatprep.subr.bf16.mxu0 0
        %1117 = vmatpush1.bf16.xpose.msra.mxu0 0
        %1118 = vmatprep.subr.bf16.mxu0 0
        %1119 = vmatpush1.bf16.xpose.msra.mxu0 0
        %1120 = vmatprep.subr.bf16.mxu0 0
        %1121 = vmatpush1.bf16.xpose.msra.mxu0 0
        %1122 = vmatprep.subr.bf16.mxu0 0
        %1123 = vmatpush1.bf16.xpose.msra.mxu0 0
        %1124 = vmatprep.subr.bf16.mxu0 0
        %1125 = vmatpush1.bf16.xpose.msra.mxu0 0
        %1126 = vmatprep.mubr.bf16.mxu0 0
        %1127 = vmatmul.mubr.bf16.gmra.mrb[0].mxu0 %v1089
        %v1128 = vpop.f32.mrb[0].mxu0
        %v1129 = vadd.f32 0.0, %v1128
        %v1130 = vpop.f32.mrb[0].mxu0
        %v1131 = vpop.f32.mrb[0].mxu0
        %v1132 = vpop.f32.mrb[0].mxu0
        %1133 = vdwg.mxu0
        %v1135 = vsel %vm1087, %v1074, 0
        %v1138 = vsel %vm1087, %v1080, 0
        %1140 = vmatprep.subr.bf16.mxu0 0
        %1141 = vmatpush1.bf16.xpose.msra.mxu0 %v1138
        %1142 = vmatprep.subr.bf16.mxu0 0
        %1143 = vmatpush1.bf16.xpose.msra.mxu0 0
        %1144 = vmatprep.subr.bf16.mxu0 0
        %1145 = vmatpush1.bf16.xpose.msra.mxu0 0
        %1146 = vmatprep.subr.bf16.mxu0 0
        %1147 = vmatpush1.bf16.xpose.msra.mxu0 0
        %1148 = vmatprep.subr.bf16.mxu0 0
        %1149 = vmatpush1.bf16.xpose.msra.mxu0 0
        %1150 = vmatprep.subr.bf16.mxu0 0
        %1151 = vmatpush1.bf16.xpose.msra.mxu0 0
        %1152 = vmatprep.subr.bf16.mxu0 0
        %1153 = vmatpush1.bf16.xpose.msra.mxu0 0
        %1154 = vmatprep.subr.bf16.mxu0 0
        %1155 = vmatpush1.bf16.xpose.msra.mxu0 0
        %1156 = vmatprep.subr.bf16.mxu0 0
        %1157 = vmatpush1.bf16.xpose.msra.mxu0 0
        %1158 = vmatprep.subr.bf16.mxu0 0
        %1159 = vmatpush1.bf16.xpose.msra.mxu0 0
        %1160 = vmatprep.subr.bf16.mxu0 0
        %1161 = vmatpush1.bf16.xpose.msra.mxu0 0
        %1162 = vmatprep.subr.bf16.mxu0 0
        %1163 = vmatpush1.bf16.xpose.msra.mxu0 0
        %1164 = vmatprep.subr.bf16.mxu0 0
        %1165 = vmatpush1.bf16.xpose.msra.mxu0 0
        %1166 = vmatprep.subr.bf16.mxu0 0
        %1167 = vmatpush1.bf16.xpose.msra.mxu0 0
        %1168 = vmatprep.subr.bf16.mxu0 0
        %1169 = vmatpush1.bf16.xpose.msra.mxu0 0
        %1170 = vmatprep.subr.bf16.mxu0 0
        %1171 = vmatpush1.bf16.xpose.msra.mxu0 0
        %1172 = vmatprep.mubr.bf16.mxu0 0
        %1173 = vmatmul.mubr.bf16.gmra.mrb[0].mxu0 %v1135
        %v1174 = vpop.f32.mrb[0].mxu0
        %v1175 = vadd.f32 0.0, %v1174
        %v1176 = vpop.f32.mrb[0].mxu0
        %v1177 = vpop.f32.mrb[0].mxu0
        %v1178 = vpop.f32.mrb[0].mxu0
        %1179 = vdwg.mxu0
        %v1180 = vsel %vm1087, %v1129, -inf
        %1181 = vmax.xlane.f32.xlu0 %v1180
        %v1182 = vpop.xlane.xlu0 %1181
        %v1183 = vsel %vm1087, %v1175, -inf
        %1184 = vmax.xlane.f32.xlu0 %v1183
        %v1185 = vpop.xlane.xlu0 %1184
        %v1186 = vsub.f32 %v1129, %v1182
        %v1187 = vsub.f32 %v1175, %v1185
        %v1188 = vmul.f32 %v1186, 1.442695
        %v1189 = vpow.pop %v1188
        %v1190 = vmul.f32 %v1187, 1.442695
        %v1191 = vpow.pop %v1190
        %v1192 = vsel %vm1087, %v1189, 0.0
        %1193 = vadd.xlane.f32.xlu0 %v1192
        %v1194 = vpop.xlane.xlu0 %1193
        %v1195 = vsel %vm1087, %v1191, 0.0
        %1196 = vadd.xlane.f32.xlu0 %v1195
        %v1197 = vpop.xlane.xlu0 %1196
        %v1198 = vrcp.pop %v1194
        %v1199 = vrcp.pop %v1197
        %v1200 = vmul.f32 %v1189, %v1198
        %v1201 = vmul.f32 %v1191, %v1199
        %v1202 = vpack.c.bf16 %v1200, %v1200
        %v1203 = vpack.c.bf16 %v1201, %v1201
        %v1205 = vsel %vm1087, %v1202, 0
        %vm1207 = vcmask 1043456
        %v1209 = vsel %vm1207, %v1085, 0
        %1211 = vmatprep.subr.bf16.mxu0 0
        %1212 = vmatpush1.bf16.msra.mxu0 %v1209
        %1213 = vmatprep.subr.bf16.mxu0 0
        %1214 = vmatpush1.bf16.msra.mxu0 0
        %1215 = vmatprep.subr.bf16.mxu0 0
        %1216 = vmatpush1.bf16.msra.mxu0 0
        %1217 = vmatprep.subr.bf16.mxu0 0
        %1218 = vmatpush1.bf16.msra.mxu0 0
        %1219 = vmatprep.subr.bf16.mxu0 0
        %1220 = vmatpush1.bf16.msra.mxu0 0
        %1221 = vmatprep.subr.bf16.mxu0 0
        %1222 = vmatpush1.bf16.msra.mxu0 0
        %1223 = vmatprep.subr.bf16.mxu0 0
        %1224 = vmatpush1.bf16.msra.mxu0 0
        %1225 = vmatprep.subr.bf16.mxu0 0
        %1226 = vmatpush1.bf16.msra.mxu0 0
        %1227 = vmatprep.subr.bf16.mxu0 0
        %1228 = vmatpush1.bf16.msra.mxu0 0
        %1229 = vmatprep.subr.bf16.mxu0 0
        %1230 = vmatpush1.bf16.msra.mxu0 0
        %1231 = vmatprep.subr.bf16.mxu0 0
        %1232 = vmatpush1.bf16.msra.mxu0 0
        %1233 = vmatprep.subr.bf16.mxu0 0
        %1234 = vmatpush1.bf16.msra.mxu0 0
        %1235 = vmatprep.subr.bf16.mxu0 0
        %1236 = vmatpush1.bf16.msra.mxu0 0
        %1237 = vmatprep.subr.bf16.mxu0 0
        %1238 = vmatpush1.bf16.msra.mxu0 0
        %1239 = vmatprep.subr.bf16.mxu0 0
        %1240 = vmatpush1.bf16.msra.mxu0 0
        %1241 = vmatprep.subr.bf16.mxu0 0
        %1242 = vmatpush1.bf16.msra.mxu0 0
        %1243 = vmatprep.mubr.bf16.mxu0 0
        %1244 = vmatmul.mubr.bf16.gmra.mrb[0].mxu0 %v1205
        %v1245 = vpop.f32.mrb[0].mxu0
        %v1246 = vadd.f32 0.0, %v1245
        %v1247 = vpop.f32.mrb[0].mxu0
        %v1248 = vpop.f32.mrb[0].mxu0
        %v1249 = vpop.f32.mrb[0].mxu0
        %1250 = vdwg.mxu0
        %v1252 = vsel %vm1087, %v1203, 0
        %v1255 = vsel %vm1207, %v1086, 0
        %1257 = vmatprep.subr.bf16.mxu0 0
        %1258 = vmatpush1.bf16.msra.mxu0 %v1255
        %1259 = vmatprep.subr.bf16.mxu0 0
        %1260 = vmatpush1.bf16.msra.mxu0 0
        %1261 = vmatprep.subr.bf16.mxu0 0
        %1262 = vmatpush1.bf16.msra.mxu0 0
        %1263 = vmatprep.subr.bf16.mxu0 0
        %1264 = vmatpush1.bf16.msra.mxu0 0
        %1265 = vmatprep.subr.bf16.mxu0 0
        %1266 = vmatpush1.bf16.msra.mxu0 0
        %1267 = vmatprep.subr.bf16.mxu0 0
        %1268 = vmatpush1.bf16.msra.mxu0 0
        %1269 = vmatprep.subr.bf16.mxu0 0
        %1270 = vmatpush1.bf16.msra.mxu0 0
        %1271 = vmatprep.subr.bf16.mxu0 0
        %1272 = vmatpush1.bf16.msra.mxu0 0
        %1273 = vmatprep.subr.bf16.mxu0 0
        %1274 = vmatpush1.bf16.msra.mxu0 0
        %1275 = vmatprep.subr.bf16.mxu0 0
        %1276 = vmatpush1.bf16.msra.mxu0 0
        %1277 = vmatprep.subr.bf16.mxu0 0
        %1278 = vmatpush1.bf16.msra.mxu0 0
        %1279 = vmatprep.subr.bf16.mxu0 0
        %1280 = vmatpush1.bf16.msra.mxu0 0
        %1281 = vmatprep.subr.bf16.mxu0 0
        %1282 = vmatpush1.bf16.msra.mxu0 0
        %1283 = vmatprep.subr.bf16.mxu0 0
        %1284 = vmatpush1.bf16.msra.mxu0 0
        %1285 = vmatprep.subr.bf16.mxu0 0
        %1286 = vmatpush1.bf16.msra.mxu0 0
        %1287 = vmatprep.subr.bf16.mxu0 0
        %1288 = vmatpush1.bf16.msra.mxu0 0
        %1289 = vmatprep.mubr.bf16.mxu0 0
        %1290 = vmatmul.mubr.bf16.gmra.mrb[0].mxu0 %v1252
        %v1291 = vpop.f32.mrb[0].mxu0
        %v1292 = vadd.f32 0.0, %v1291
        %v1293 = vpop.f32.mrb[0].mxu0
        %v1294 = vpop.f32.mrb[0].mxu0
        %v1295 = vpop.f32.mrb[0].mxu0
        %1296 = vdwg.mxu0
        %v1297 = vpack.c.bf16 %v1246, %v1246
        %v1298 = vpack.c.bf16 %v1292, %v1292
        %vm1299 = vcmask 60416
        %1300 = vst.msk [vmem:[#allocation3] sm:$0xf] %vm1299, %v1297
        %1301 = vst.msk [vmem:[#allocation3 + $0x4] sm:$0xf] %vm1299, %v1298
        %1302 = vrot.lane.b32.xlu0 %v1073, 120
        %v1303 = vpop.permute.xlu0 %1302
        %1304 = vrot.lane.b32.xlu0 %v1079, 120
        %v1305 = vpop.permute.xlu0 %1304
        %v1307 = vsel %vm1087, %v1303, 0
        %v1310 = vsel %vm1087, %v1305, 0
        %1312 = vmatprep.subr.bf16.mxu0 0
        %1313 = vmatpush1.bf16.xpose.msra.mxu0 %v1310
        %1314 = vmatprep.subr.bf16.mxu0 0
        %1315 = vmatpush1.bf16.xpose.msra.mxu0 0
        %1316 = vmatprep.subr.bf16.mxu0 0
        %1317 = vmatpush1.bf16.xpose.msra.mxu0 0
        %1318 = vmatprep.subr.bf16.mxu0 0
        %1319 = vmatpush1.bf16.xpose.msra.mxu0 0
        %1320 = vmatprep.subr.bf16.mxu0 0
        %1321 = vmatpush1.bf16.xpose.msra.mxu0 0
        %1322 = vmatprep.subr.bf16.mxu0 0
        %1323 = vmatpush1.bf16.xpose.msra.mxu0 0
        %1324 = vmatprep.subr.bf16.mxu0 0
        %1325 = vmatpush1.bf16.xpose.msra.mxu0 0
        %1326 = vmatprep.subr.bf16.mxu0 0
        %1327 = vmatpush1.bf16.xpose.msra.mxu0 0
        %1328 = vmatprep.subr.bf16.mxu0 0
        %1329 = vmatpush1.bf16.xpose.msra.mxu0 0
        %1330 = vmatprep.subr.bf16.mxu0 0
        %1331 = vmatpush1.bf16.xpose.msra.mxu0 0
        %1332 = vmatprep.subr.bf16.mxu0 0
        %1333 = vmatpush1.bf16.xpose.msra.mxu0 0
        %1334 = vmatprep.subr.bf16.mxu0 0
        %1335 = vmatpush1.bf16.xpose.msra.mxu0 0
        %1336 = vmatprep.subr.bf16.mxu0 0
        %1337 = vmatpush1.bf16.xpose.msra.mxu0 0
        %1338 = vmatprep.subr.bf16.mxu0 0
        %1339 = vmatpush1.bf16.xpose.msra.mxu0 0
        %1340 = vmatprep.subr.bf16.mxu0 0
        %1341 = vmatpush1.bf16.xpose.msra.mxu0 0
        %1342 = vmatprep.subr.bf16.mxu0 0
        %1343 = vmatpush1.bf16.xpose.msra.mxu0 0
        %1344 = vmatprep.mubr.bf16.mxu0 0
        %1345 = vmatmul.mubr.bf16.gmra.mrb[0].mxu0 %v1307
        %v1346 = vpop.f32.mrb[0].mxu0
        %v1347 = vadd.f32 0.0, %v1346
        %v1348 = vpop.f32.mrb[0].mxu0
        %v1349 = vpop.f32.mrb[0].mxu0
        %v1350 = vpop.f32.mrb[0].mxu0
        %1351 = vdwg.mxu0
        %1352 = vrot.lane.b32.xlu0 %v1074, 120
        %v1353 = vpop.permute.xlu0 %1352
        %1354 = vrot.lane.b32.xlu0 %v1080, 120
        %v1355 = vpop.permute.xlu0 %1354
        %v1357 = vsel %vm1087, %v1353, 0
        %v1360 = vsel %vm1087, %v1355, 0
        %1362 = vmatprep.subr.bf16.mxu0 0
        %1363 = vmatpush1.bf16.xpose.msra.mxu0 %v1360
        %1364 = vmatprep.subr.bf16.mxu0 0
        %1365 = vmatpush1.bf16.xpose.msra.mxu0 0
        %1366 = vmatprep.subr.bf16.mxu0 0
        %1367 = vmatpush1.bf16.xpose.msra.mxu0 0
        %1368 = vmatprep.subr.bf16.mxu0 0
        %1369 = vmatpush1.bf16.xpose.msra.mxu0 0
        %1370 = vmatprep.subr.bf16.mxu0 0
        %1371 = vmatpush1.bf16.xpose.msra.mxu0 0
        %1372 = vmatprep.subr.bf16.mxu0 0
        %1373 = vmatpush1.bf16.xpose.msra.mxu0 0
        %1374 = vmatprep.subr.bf16.mxu0 0
        %1375 = vmatpush1.bf16.xpose.msra.mxu0 0
        %1376 = vmatprep.subr.bf16.mxu0 0
        %1377 = vmatpush1.bf16.xpose.msra.mxu0 0
        %1378 = vmatprep.subr.bf16.mxu0 0
        %1379 = vmatpush1.bf16.xpose.msra.mxu0 0
        %1380 = vmatprep.subr.bf16.mxu0 0
        %1381 = vmatpush1.bf16.xpose.msra.mxu0 0
        %1382 = vmatprep.subr.bf16.mxu0 0
        %1383 = vmatpush1.bf16.xpose.msra.mxu0 0
        %1384 = vmatprep.subr.bf16.mxu0 0
        %1385 = vmatpush1.bf16.xpose.msra.mxu0 0
        %1386 = vmatprep.subr.bf16.mxu0 0
        %1387 = vmatpush1.bf16.xpose.msra.mxu0 0
        %1388 = vmatprep.subr.bf16.mxu0 0
        %1389 = vmatpush1.bf16.xpose.msra.mxu0 0
        %1390 = vmatprep.subr.bf16.mxu0 0
        %1391 = vmatpush1.bf16.xpose.msra.mxu0 0
        %1392 = vmatprep.subr.bf16.mxu0 0
        %1393 = vmatpush1.bf16.xpose.msra.mxu0 0
        %1394 = vmatprep.mubr.bf16.mxu0 0
        %1395 = vmatmul.mubr.bf16.gmra.mrb[0].mxu0 %v1357
        %v1396 = vpop.f32.mrb[0].mxu0
        %v1397 = vadd.f32 0.0, %v1396
        %v1398 = vpop.f32.mrb[0].mxu0
        %v1399 = vpop.f32.mrb[0].mxu0
        %v1400 = vpop.f32.mrb[0].mxu0
        %1401 = vdwg.mxu0
        %v1402 = vsel %vm1087, %v1347, -inf
        %1403 = vmax.xlane.f32.xlu0 %v1402
        %v1404 = vpop.xlane.xlu0 %1403
        %v1405 = vsel %vm1087, %v1397, -inf
        %1406 = vmax.xlane.f32.xlu0 %v1405
        %v1407 = vpop.xlane.xlu0 %1406
        %v1408 = vsub.f32 %v1347, %v1404
        %v1409 = vsub.f32 %v1397, %v1407
        %v1410 = vmul.f32 %v1408, 1.442695
        %v1411 = vpow.pop %v1410
        %v1412 = vmul.f32 %v1409, 1.442695
        %v1413 = vpow.pop %v1412
        %v1414 = vsel %vm1087, %v1411, 0.0
        %1415 = vadd.xlane.f32.xlu0 %v1414
        %v1416 = vpop.xlane.xlu0 %1415
        %v1417 = vsel %vm1087, %v1413, 0.0
        %1418 = vadd.xlane.f32.xlu0 %v1417
        %v1419 = vpop.xlane.xlu0 %1418
        %v1420 = vrcp.pop %v1416
        %v1421 = vrcp.pop %v1419
        %v1422 = vmul.f32 %v1411, %v1420
        %v1423 = vmul.f32 %v1413, %v1421
        %v1424 = vpack.c.bf16 %v1422, %v1422
        %v1425 = vpack.c.bf16 %v1423, %v1423
        %1426 = vrot.lane.b32.xlu0 %v1085, 120
        %v1427 = vpop.permute.xlu0 %1426
        %v1429 = vsel %vm1087, %v1424, 0
        %v1432 = vsel %vm1207, %v1427, 0
        %1434 = vmatprep.subr.bf16.mxu0 0
        %1435 = vmatpush1.bf16.msra.mxu0 %v1432
        %1436 = vmatprep.subr.bf16.mxu0 0
        %1437 = vmatpush1.bf16.msra.mxu0 0
        %1438 = vmatprep.subr.bf16.mxu0 0
        %1439 = vmatpush1.bf16.msra.mxu0 0
        %1440 = vmatprep.subr.bf16.mxu0 0
        %1441 = vmatpush1.bf16.msra.mxu0 0
        %1442 = vmatprep.subr.bf16.mxu0 0
        %1443 = vmatpush1.bf16.msra.mxu0 0
        %1444 = vmatprep.subr.bf16.mxu0 0
        %1445 = vmatpush1.bf16.msra.mxu0 0
        %1446 = vmatprep.subr.bf16.mxu0 0
        %1447 = vmatpush1.bf16.msra.mxu0 0
        %1448 = vmatprep.subr.bf16.mxu0 0
        %1449 = vmatpush1.bf16.msra.mxu0 0
        %1450 = vmatprep.subr.bf16.mxu0 0
        %1451 = vmatpush1.bf16.msra.mxu0 0
        %1452 = vmatprep.subr.bf16.mxu0 0
        %1453 = vmatpush1.bf16.msra.mxu0 0
        %1454 = vmatprep.subr.bf16.mxu0 0
        %1455 = vmatpush1.bf16.msra.mxu0 0
        %1456 = vmatprep.subr.bf16.mxu0 0
        %1457 = vmatpush1.bf16.msra.mxu0 0
        %1458 = vmatprep.subr.bf16.mxu0 0
        %1459 = vmatpush1.bf16.msra.mxu0 0
        %1460 = vmatprep.subr.bf16.mxu0 0
        %1461 = vmatpush1.bf16.msra.mxu0 0
        %1462 = vmatprep.subr.bf16.mxu0 0
        %1463 = vmatpush1.bf16.msra.mxu0 0
        %1464 = vmatprep.subr.bf16.mxu0 0
        %1465 = vmatpush1.bf16.msra.mxu0 0
        %1466 = vmatprep.mubr.bf16.mxu0 0
        %1467 = vmatmul.mubr.bf16.gmra.mrb[0].mxu0 %v1429
        %v1468 = vpop.f32.mrb[0].mxu0
        %v1469 = vadd.f32 0.0, %v1468
        %v1470 = vpop.f32.mrb[0].mxu0
        %v1471 = vpop.f32.mrb[0].mxu0
        %v1472 = vpop.f32.mrb[0].mxu0
        %1473 = vdwg.mxu0
        %1474 = vrot.lane.b32.xlu0 %v1086, 120
        %v1475 = vpop.permute.xlu0 %1474
        %v1477 = vsel %vm1087, %v1425, 0
        %v1480 = vsel %vm1207, %v1475, 0
        %1482 = vmatprep.subr.bf16.mxu0 0
        %1483 = vmatpush1.bf16.msra.mxu0 %v1480
        %1484 = vmatprep.subr.bf16.mxu0 0
        %1485 = vmatpush1.bf16.msra.mxu0 0
        %1486 = vmatprep.subr.bf16.mxu0 0
        %1487 = vmatpush1.bf16.msra.mxu0 0
        %1488 = vmatprep.subr.bf16.mxu0 0
        %1489 = vmatpush1.bf16.msra.mxu0 0
        %1490 = vmatprep.subr.bf16.mxu0 0
        %1491 = vmatpush1.bf16.msra.mxu0 0
        %1492 = vmatprep.subr.bf16.mxu0 0
        %1493 = vmatpush1.bf16.msra.mxu0 0
        %1494 = vmatprep.subr.bf16.mxu0 0
        %1495 = vmatpush1.bf16.msra.mxu0 0
        %1496 = vmatprep.subr.bf16.mxu0 0
        %1497 = vmatpush1.bf16.msra.mxu0 0
        %1498 = vmatprep.subr.bf16.mxu0 0
        %1499 = vmatpush1.bf16.msra.mxu0 0
        %1500 = vmatprep.subr.bf16.mxu0 0
        %1501 = vmatpush1.bf16.msra.mxu0 0
        %1502 = vmatprep.subr.bf16.mxu0 0
        %1503 = vmatpush1.bf16.msra.mxu0 0
        %1504 = vmatprep.subr.bf16.mxu0 0
        %1505 = vmatpush1.bf16.msra.mxu0 0
        %1506 = vmatprep.subr.bf16.mxu0 0
        %1507 = vmatpush1.bf16.msra.mxu0 0
        %1508 = vmatprep.subr.bf16.mxu0 0
        %1509 = vmatpush1.bf16.msra.mxu0 0
        %1510 = vmatprep.subr.bf16.mxu0 0
        %1511 = vmatpush1.bf16.msra.mxu0 0
        %1512 = vmatprep.subr.bf16.mxu0 0
        %1513 = vmatpush1.bf16.msra.mxu0 0
        %1514 = vmatprep.mubr.bf16.mxu0 0
        %1515 = vmatmul.mubr.bf16.gmra.mrb[0].mxu0 %v1477
        %v1516 = vpop.f32.mrb[0].mxu0
        %v1517 = vadd.f32 0.0, %v1516
        %v1518 = vpop.f32.mrb[0].mxu0
        %v1519 = vpop.f32.mrb[0].mxu0
        %v1520 = vpop.f32.mrb[0].mxu0
        %1521 = vdwg.mxu0
        %v1522 = vpack.c.bf16 %v1469, %v1469
        %v1523 = vpack.c.bf16 %v1517, %v1517
        %v1526 = vunpack.c.l.b16 %v1522
        %v1527 = vunpack.c.l.b16 %v1523
        %v1528 = vpack.c.b16 %v1526, %v1526
        %v1529 = vpack.c.b16 %v1527, %v1527
        %1530 = vrot.lane.b32.xlu0 %v1528, 8
        %v1531 = vpop.permute.xlu0 %1530
        %1532 = vrot.lane.b32.xlu0 %v1529, 8
        %v1533 = vpop.permute.xlu0 %1532
        %vm1536 = vcmask 126016
        %1537 = vst.msk [vmem:[#allocation3] sm:$0xf] %vm1536, %v1531
        %1538 = vst.msk [vmem:[#allocation3 + $0x4] sm:$0xf] %vm1536, %v1533
        %1539 = vrot.lane.b32.xlu0 %v1073, 112
        %v1540 = vpop.permute.xlu0 %1539
        %1541 = vrot.lane.b32.xlu0 %v1079, 112
        %v1542 = vpop.permute.xlu0 %1541
        %v1544 = vsel %vm1087, %v1540, 0
        %v1547 = vsel %vm1087, %v1542, 0
        %1549 = vmatprep.subr.bf16.mxu0 0
        %1550 = vmatpush1.bf16.xpose.msra.mxu0 %v1547
        %1551 = vmatprep.subr.bf16.mxu0 0
        %1552 = vmatpush1.bf16.xpose.msra.mxu0 0
        %1553 = vmatprep.subr.bf16.mxu0 0
        %1554 = vmatpush1.bf16.xpose.msra.mxu0 0
        %1555 = vmatprep.subr.bf16.mxu0 0
        %1556 = vmatpush1.bf16.xpose.msra.mxu0 0
        %1557 = vmatprep.subr.bf16.mxu0 0
        %1558 = vmatpush1.bf16.xpose.msra.mxu0 0
        %1559 = vmatprep.subr.bf16.mxu0 0
        %1560 = vmatpush1.bf16.xpose.msra.mxu0 0
        %1561 = vmatprep.subr.bf16.mxu0 0
        %1562 = vmatpush1.bf16.xpose.msra.mxu0 0
        %1563 = vmatprep.subr.bf16.mxu0 0
        %1564 = vmatpush1.bf16.xpose.msra.mxu0 0
        %1565 = vmatprep.subr.bf16.mxu0 0
        %1566 = vmatpush1.bf16.xpose.msra.mxu0 0
        %1567 = vmatprep.subr.bf16.mxu0 0
        %1568 = vmatpush1.bf16.xpose.msra.mxu0 0
        %1569 = vmatprep.subr.bf16.mxu0 0
        %1570 = vmatpush1.bf16.xpose.msra.mxu0 0
        %1571 = vmatprep.subr.bf16.mxu0 0
        %1572 = vmatpush1.bf16.xpose.msra.mxu0 0
        %1573 = vmatprep.subr.bf16.mxu0 0
        %1574 = vmatpush1.bf16.xpose.msra.mxu0 0
        %1575 = vmatprep.subr.bf16.mxu0 0
        %1576 = vmatpush1.bf16.xpose.msra.mxu0 0
        %1577 = vmatprep.subr.bf16.mxu0 0
        %1578 = vmatpush1.bf16.xpose.msra.mxu0 0
        %1579 = vmatprep.subr.bf16.mxu0 0
        %1580 = vmatpush1.bf16.xpose.msra.mxu0 0
        %1581 = vmatprep.mubr.bf16.mxu0 0
        %1582 = vmatmul.mubr.bf16.gmra.mrb[0].mxu0 %v1544
        %v1583 = vpop.f32.mrb[0].mxu0
        %v1584 = vadd.f32 0.0, %v1583
        %v1585 = vpop.f32.mrb[0].mxu0
        %v1586 = vpop.f32.mrb[0].mxu0
        %v1587 = vpop.f32.mrb[0].mxu0
        %1588 = vdwg.mxu0
        %1589 = vrot.lane.b32.xlu0 %v1074, 112
        %v1590 = vpop.permute.xlu0 %1589
        %1591 = vrot.lane.b32.xlu0 %v1080, 112
        %v1592 = vpop.permute.xlu0 %1591
        %v1594 = vsel %vm1087, %v1590, 0
        %v1597 = vsel %vm1087, %v1592, 0
        %1599 = vmatprep.subr.bf16.mxu0 0
        %1600 = vmatpush1.bf16.xpose.msra.mxu0 %v1597
        %1601 = vmatprep.subr.bf16.mxu0 0
        %1602 = vmatpush1.bf16.xpose.msra.mxu0 0
        %1603 = vmatprep.subr.bf16.mxu0 0
        %1604 = vmatpush1.bf16.xpose.msra.mxu0 0
        %1605 = vmatprep.subr.bf16.mxu0 0
        %1606 = vmatpush1.bf16.xpose.msra.mxu0 0
        %1607 = vmatprep.subr.bf16.mxu0 0
        %1608 = vmatpush1.bf16.xpose.msra.mxu0 0
        %1609 = vmatprep.subr.bf16.mxu0 0
        %1610 = vmatpush1.bf16.xpose.msra.mxu0 0
        %1611 = vmatprep.subr.bf16.mxu0 0
        %1612 = vmatpush1.bf16.xpose.msra.mxu0 0
        %1613 = vmatprep.subr.bf16.mxu0 0
        %1614 = vmatpush1.bf16.xpose.msra.mxu0 0
        %1615 = vmatprep.subr.bf16.mxu0 0
        %1616 = vmatpush1.bf16.xpose.msra.mxu0 0
        %1617 = vmatprep.subr.bf16.mxu0 0
        %1618 = vmatpush1.bf16.xpose.msra.mxu0 0
        %1619 = vmatprep.subr.bf16.mxu0 0
        %1620 = vmatpush1.bf16.xpose.msra.mxu0 0
        %1621 = vmatprep.subr.bf16.mxu0 0
        %1622 = vmatpush1.bf16.xpose.msra.mxu0 0
        %1623 = vmatprep.subr.bf16.mxu0 0
        %1624 = vmatpush1.bf16.xpose.msra.mxu0 0
        %1625 = vmatprep.subr.bf16.mxu0 0
        %1626 = vmatpush1.bf16.xpose.msra.mxu0 0
        %1627 = vmatprep.subr.bf16.mxu0 0
        %1628 = vmatpush1.bf16.xpose.msra.mxu0 0
        %1629 = vmatprep.subr.bf16.mxu0 0
        %1630 = vmatpush1.bf16.xpose.msra.mxu0 0
        %1631 = vmatprep.mubr.bf16.mxu0 0
        %1632 = vmatmul.mubr.bf16.gmra.mrb[0].mxu0 %v1594
        %v1633 = vpop.f32.mrb[0].mxu0
        %v1634 = vadd.f32 0.0, %v1633
        %v1635 = vpop.f32.mrb[0].mxu0
        %v1636 = vpop.f32.mrb[0].mxu0
        %v1637 = vpop.f32.mrb[0].mxu0
        %1638 = vdwg.mxu0
        %v1639 = vsel %vm1087, %v1584, -inf
        %1640 = vmax.xlane.f32.xlu0 %v1639
        %v1641 = vpop.xlane.xlu0 %1640
        %v1642 = vsel %vm1087, %v1634, -inf
        %1643 = vmax.xlane.f32.xlu0 %v1642
        %v1644 = vpop.xlane.xlu0 %1643
        %v1645 = vsub.f32 %v1584, %v1641
        %v1646 = vsub.f32 %v1634, %v1644
        %v1647 = vmul.f32 %v1645, 1.442695
        %v1648 = vpow.pop %v1647
        %v1649 = vmul.f32 %v1646, 1.442695
        %v1650 = vpow.pop %v1649
        %v1651 = vsel %vm1087, %v1648, 0.0
        %1652 = vadd.xlane.f32.xlu0 %v1651
        %v1653 = vpop.xlane.xlu0 %1652
        %v1654 = vsel %vm1087, %v1650, 0.0
        %1655 = vadd.xlane.f32.xlu0 %v1654
        %v1656 = vpop.xlane.xlu0 %1655
        %v1657 = vrcp.pop %v1653
        %v1658 = vrcp.pop %v1656
        %v1659 = vmul.f32 %v1648, %v1657
        %v1660 = vmul.f32 %v1650, %v1658
        %v1661 = vpack.c.bf16 %v1659, %v1659
        %v1662 = vpack.c.bf16 %v1660, %v1660
        %1663 = vrot.lane.b32.xlu0 %v1085, 112
        %v1664 = vpop.permute.xlu0 %1663
        %v1666 = vsel %vm1087, %v1661, 0
        %v1669 = vsel %vm1207, %v1664, 0
        %1671 = vmatprep.subr.bf16.mxu0 0
        %1672 = vmatpush1.bf16.msra.mxu0 %v1669
        %1673 = vmatprep.subr.bf16.mxu0 0
        %1674 = vmatpush1.bf16.msra.mxu0 0
        %1675 = vmatprep.subr.bf16.mxu0 0
        %1676 = vmatpush1.bf16.msra.mxu0 0
        %1677 = vmatprep.subr.bf16.mxu0 0
        %1678 = vmatpush1.bf16.msra.mxu0 0
        %1679 = vmatprep.subr.bf16.mxu0 0
        %1680 = vmatpush1.bf16.msra.mxu0 0
        %1681 = vmatprep.subr.bf16.mxu0 0
        %1682 = vmatpush1.bf16.msra.mxu0 0
        %1683 = vmatprep.subr.bf16.mxu0 0
        %1684 = vmatpush1.bf16.msra.mxu0 0
        %1685 = vmatprep.subr.bf16.mxu0 0
        %1686 = vmatpush1.bf16.msra.mxu0 0
        %1687 = vmatprep.subr.bf16.mxu0 0
        %1688 = vmatpush1.bf16.msra.mxu0 0
        %1689 = vmatprep.subr.bf16.mxu0 0
        %1690 = vmatpush1.bf16.msra.mxu0 0
        %1691 = vmatprep.subr.bf16.mxu0 0
        %1692 = vmatpush1.bf16.msra.mxu0 0
        %1693 = vmatprep.subr.bf16.mxu0 0
        %1694 = vmatpush1.bf16.msra.mxu0 0
        %1695 = vmatprep.subr.bf16.mxu0 0
        %1696 = vmatpush1.bf16.msra.mxu0 0
        %1697 = vmatprep.subr.bf16.mxu0 0
        %1698 = vmatpush1.bf16.msra.mxu0 0
        %1699 = vmatprep.subr.bf16.mxu0 0
        %1700 = vmatpush1.bf16.msra.mxu0 0
        %1701 = vmatprep.subr.bf16.mxu0 0
        %1702 = vmatpush1.bf16.msra.mxu0 0
        %1703 = vmatprep.mubr.bf16.mxu0 0
        %1704 = vmatmul.mubr.bf16.gmra.mrb[0].mxu0 %v1666
        %v1705 = vpop.f32.mrb[0].mxu0
        %v1706 = vadd.f32 0.0, %v1705
        %v1707 = vpop.f32.mrb[0].mxu0
        %v1708 = vpop.f32.mrb[0].mxu0
        %v1709 = vpop.f32.mrb[0].mxu0
        %1710 = vdwg.mxu0
        %1711 = vrot.lane.b32.xlu0 %v1086, 112
        %v1712 = vpop.permute.xlu0 %1711
        %v1714 = vsel %vm1087, %v1662, 0
        %v1717 = vsel %vm1207, %v1712, 0
        %1719 = vmatprep.subr.bf16.mxu0 0
        %1720 = vmatpush1.bf16.msra.mxu0 %v1717
        %1721 = vmatprep.subr.bf16.mxu0 0
        %1722 = vmatpush1.bf16.msra.mxu0 0
        %1723 = vmatprep.subr.bf16.mxu0 0
        %1724 = vmatpush1.bf16.msra.mxu0 0
        %1725 = vmatprep.subr.bf16.mxu0 0
        %1726 = vmatpush1.bf16.msra.mxu0 0
        %1727 = vmatprep.subr.bf16.mxu0 0
        %1728 = vmatpush1.bf16.msra.mxu0 0
        %1729 = vmatprep.subr.bf16.mxu0 0
        %1730 = vmatpush1.bf16.msra.mxu0 0
        %1731 = vmatprep.subr.bf16.mxu0 0
        %1732 = vmatpush1.bf16.msra.mxu0 0
        %1733 = vmatprep.subr.bf16.mxu0 0
        %1734 = vmatpush1.bf16.msra.mxu0 0
        %1735 = vmatprep.subr.bf16.mxu0 0
        %1736 = vmatpush1.bf16.msra.mxu0 0
        %1737 = vmatprep.subr.bf16.mxu0 0
        %1738 = vmatpush1.bf16.msra.mxu0 0
        %1739 = vmatprep.subr.bf16.mxu0 0
        %1740 = vmatpush1.bf16.msra.mxu0 0
        %1741 = vmatprep.subr.bf16.mxu0 0
        %1742 = vmatpush1.bf16.msra.mxu0 0
        %1743 = vmatprep.subr.bf16.mxu0 0
        %1744 = vmatpush1.bf16.msra.mxu0 0
        %1745 = vmatprep.subr.bf16.mxu0 0
        %1746 = vmatpush1.bf16.msra.mxu0 0
        %1747 = vmatprep.subr.bf16.mxu0 0
        %1748 = vmatpush1.bf16.msra.mxu0 0
        %1749 = vmatprep.subr.bf16.mxu0 0
        %1750 = vmatpush1.bf16.msra.mxu0 0
        %1751 = vmatprep.mubr.bf16.mxu0 0
        %1752 = vmatmul.mubr.bf16.gmra.mrb[0].mxu0 %v1714
        %v1753 = vpop.f32.mrb[0].mxu0
        %v1754 = vadd.f32 0.0, %v1753
        %v1755 = vpop.f32.mrb[0].mxu0
        %v1756 = vpop.f32.mrb[0].mxu0
        %v1757 = vpop.f32.mrb[0].mxu0
        %1758 = vdwg.mxu0
        %v1759 = vpack.c.bf16 %v1706, %v1706
        %v1760 = vpack.c.bf16 %v1754, %v1754
        %v1763 = vunpack.c.l.b16 %v1759
        %v1764 = vunpack.c.l.b16 %v1760
        %v1765 = vpack.c.b16 %v1763, %v1763
        %v1766 = vpack.c.b16 %v1764, %v1764
        %1767 = vrot.lane.b32.xlu0 %v1765, 16
        %v1768 = vpop.permute.xlu0 %1767
        %1769 = vrot.lane.b32.xlu0 %v1766, 16
        %v1770 = vpop.permute.xlu0 %1769
        %vm1773 = vcmask 191616
        %1774 = vst.msk [vmem:[#allocation3] sm:$0xf] %vm1773, %v1768
        %1775 = vst.msk [vmem:[#allocation3 + $0x4] sm:$0xf] %vm1773, %v1770
        %1776 = vrot.lane.b32.xlu0 %v1073, 104
        %v1777 = vpop.permute.xlu0 %1776
        %1778 = vrot.lane.b32.xlu0 %v1079, 104
        %v1779 = vpop.permute.xlu0 %1778
        %v1781 = vsel %vm1087, %v1777, 0
        %v1784 = vsel %vm1087, %v1779, 0
        %1786 = vmatprep.subr.bf16.mxu0 0
        %1787 = vmatpush1.bf16.xpose.msra.mxu0 %v1784
        %1788 = vmatprep.subr.bf16.mxu0 0
        %1789 = vmatpush1.bf16.xpose.msra.mxu0 0
        %1790 = vmatprep.subr.bf16.mxu0 0
        %1791 = vmatpush1.bf16.xpose.msra.mxu0 0
        %1792 = vmatprep.subr.bf16.mxu0 0
        %1793 = vmatpush1.bf16.xpose.msra.mxu0 0
        %1794 = vmatprep.subr.bf16.mxu0 0
        %1795 = vmatpush1.bf16.xpose.msra.mxu0 0
        %1796 = vmatprep.subr.bf16.mxu0 0
        %1797 = vmatpush1.bf16.xpose.msra.mxu0 0
        %1798 = vmatprep.subr.bf16.mxu0 0
        %1799 = vmatpush1.bf16.xpose.msra.mxu0 0
        %1800 = vmatprep.subr.bf16.mxu0 0
        %1801 = vmatpush1.bf16.xpose.msra.mxu0 0
        %1802 = vmatprep.subr.bf16.mxu0 0
        %1803 = vmatpush1.bf16.xpose.msra.mxu0 0
        %1804 = vmatprep.subr.bf16.mxu0 0
        %1805 = vmatpush1.bf16.xpose.msra.mxu0 0
        %1806 = vmatprep.subr.bf16.mxu0 0
        %1807 = vmatpush1.bf16.xpose.msra.mxu0 0
        %1808 = vmatprep.subr.bf16.mxu0 0
        %1809 = vmatpush1.bf16.xpose.msra.mxu0 0
        %1810 = vmatprep.subr.bf16.mxu0 0
        %1811 = vmatpush1.bf16.xpose.msra.mxu0 0
        %1812 = vmatprep.subr.bf16.mxu0 0
        %1813 = vmatpush1.bf16.xpose.msra.mxu0 0
        %1814 = vmatprep.subr.bf16.mxu0 0
        %1815 = vmatpush1.bf16.xpose.msra.mxu0 0
        %1816 = vmatprep.subr.bf16.mxu0 0
        %1817 = vmatpush1.bf16.xpose.msra.mxu0 0
        %1818 = vmatprep.mubr.bf16.mxu0 0
        %1819 = vmatmul.mubr.bf16.gmra.mrb[0].mxu0 %v1781
        %v1820 = vpop.f32.mrb[0].mxu0
        %v1821 = vadd.f32 0.0, %v1820
        %v1822 = vpop.f32.mrb[0].mxu0
        %v1823 = vpop.f32.mrb[0].mxu0
        %v1824 = vpop.f32.mrb[0].mxu0
        %1825 = vdwg.mxu0
        %1826 = vrot.lane.b32.xlu0 %v1074, 104
        %v1827 = vpop.permute.xlu0 %1826
        %1828 = vrot.lane.b32.xlu0 %v1080, 104
        %v1829 = vpop.permute.xlu0 %1828
        %v1831 = vsel %vm1087, %v1827, 0
        %v1834 = vsel %vm1087, %v1829, 0
        %1836 = vmatprep.subr.bf16.mxu0 0
        %1837 = vmatpush1.bf16.xpose.msra.mxu0 %v1834
        %1838 = vmatprep.subr.bf16.mxu0 0
        %1839 = vmatpush1.bf16.xpose.msra.mxu0 0
        %1840 = vmatprep.subr.bf16.mxu0 0
        %1841 = vmatpush1.bf16.xpose.msra.mxu0 0
        %1842 = vmatprep.subr.bf16.mxu0 0
        %1843 = vmatpush1.bf16.xpose.msra.mxu0 0
        %1844 = vmatprep.subr.bf16.mxu0 0
        %1845 = vmatpush1.bf16.xpose.msra.mxu0 0
        %1846 = vmatprep.subr.bf16.mxu0 0
        %1847 = vmatpush1.bf16.xpose.msra.mxu0 0
        %1848 = vmatprep.subr.bf16.mxu0 0
        %1849 = vmatpush1.bf16.xpose.msra.mxu0 0
        %1850 = vmatprep.subr.bf16.mxu0 0
        %1851 = vmatpush1.bf16.xpose.msra.mxu0 0
        %1852 = vmatprep.subr.bf16.mxu0 0
        %1853 = vmatpush1.bf16.xpose.msra.mxu0 0
        %1854 = vmatprep.subr.bf16.mxu0 0
        %1855 = vmatpush1.bf16.xpose.msra.mxu0 0
        %1856 = vmatprep.subr.bf16.mxu0 0
        %1857 = vmatpush1.bf16.xpose.msra.mxu0 0
        %1858 = vmatprep.subr.bf16.mxu0 0
        %1859 = vmatpush1.bf16.xpose.msra.mxu0 0
        %1860 = vmatprep.subr.bf16.mxu0 0
        %1861 = vmatpush1.bf16.xpose.msra.mxu0 0
        %1862 = vmatprep.subr.bf16.mxu0 0
        %1863 = vmatpush1.bf16.xpose.msra.mxu0 0
        %1864 = vmatprep.subr.bf16.mxu0 0
        %1865 = vmatpush1.bf16.xpose.msra.mxu0 0
        %1866 = vmatprep.subr.bf16.mxu0 0
        %1867 = vmatpush1.bf16.xpose.msra.mxu0 0
        %1868 = vmatprep.mubr.bf16.mxu0 0
        %1869 = vmatmul.mubr.bf16.gmra.mrb[0].mxu0 %v1831
        %v1870 = vpop.f32.mrb[0].mxu0
        %v1871 = vadd.f32 0.0, %v1870
        %v1872 = vpop.f32.mrb[0].mxu0
        %v1873 = vpop.f32.mrb[0].mxu0
        %v1874 = vpop.f32.mrb[0].mxu0
        %1875 = vdwg.mxu0
        %v1876 = vsel %vm1087, %v1821, -inf
        %1877 = vmax.xlane.f32.xlu0 %v1876
        %v1878 = vpop.xlane.xlu0 %1877
        %v1879 = vsel %vm1087, %v1871, -inf
        %1880 = vmax.xlane.f32.xlu0 %v1879
        %v1881 = vpop.xlane.xlu0 %1880
        %v1882 = vsub.f32 %v1821, %v1878
        %v1883 = vsub.f32 %v1871, %v1881
        %v1884 = vmul.f32 %v1882, 1.442695
        %v1885 = vpow.pop %v1884
        %v1886 = vmul.f32 %v1883, 1.442695
        %v1887 = vpow.pop %v1886
        %v1888 = vsel %vm1087, %v1885, 0.0
        %1889 = vadd.xlane.f32.xlu0 %v1888
        %v1890 = vpop.xlane.xlu0 %1889
        %v1891 = vsel %vm1087, %v1887, 0.0
        %1892 = vadd.xlane.f32.xlu0 %v1891
        %v1893 = vpop.xlane.xlu0 %1892
        %v1894 = vrcp.pop %v1890
        %v1895 = vrcp.pop %v1893
        %v1896 = vmul.f32 %v1885, %v1894
        %v1897 = vmul.f32 %v1887, %v1895
        %v1898 = vpack.c.bf16 %v1896, %v1896
        %v1899 = vpack.c.bf16 %v1897, %v1897
        %1900 = vrot.lane.b32.xlu0 %v1085, 104
        %v1901 = vpop.permute.xlu0 %1900
        %v1903 = vsel %vm1087, %v1898, 0
        %v1906 = vsel %vm1207, %v1901, 0
        %1908 = vmatprep.subr.bf16.mxu0 0
        %1909 = vmatpush1.bf16.msra.mxu0 %v1906
        %1910 = vmatprep.subr.bf16.mxu0 0
        %1911 = vmatpush1.bf16.msra.mxu0 0
        %1912 = vmatprep.subr.bf16.mxu0 0
        %1913 = vmatpush1.bf16.msra.mxu0 0
        %1914 = vmatprep.subr.bf16.mxu0 0
        %1915 = vmatpush1.bf16.msra.mxu0 0
        %1916 = vmatprep.subr.bf16.mxu0 0
        %1917 = vmatpush1.bf16.msra.mxu0 0
        %1918 = vmatprep.subr.bf16.mxu0 0
        %1919 = vmatpush1.bf16.msra.mxu0 0
        %1920 = vmatprep.subr.bf16.mxu0 0
        %1921 = vmatpush1.bf16.msra.mxu0 0
        %1922 = vmatprep.subr.bf16.mxu0 0
        %1923 = vmatpush1.bf16.msra.mxu0 0
        %1924 = vmatprep.subr.bf16.mxu0 0
        %1925 = vmatpush1.bf16.msra.mxu0 0
        %1926 = vmatprep.subr.bf16.mxu0 0
        %1927 = vmatpush1.bf16.msra.mxu0 0
        %1928 = vmatprep.subr.bf16.mxu0 0
        %1929 = vmatpush1.bf16.msra.mxu0 0
        %1930 = vmatprep.subr.bf16.mxu0 0
        %1931 = vmatpush1.bf16.msra.mxu0 0
        %1932 = vmatprep.subr.bf16.mxu0 0
        %1933 = vmatpush1.bf16.msra.mxu0 0
        %1934 = vmatprep.subr.bf16.mxu0 0
        %1935 = vmatpush1.bf16.msra.mxu0 0
        %1936 = vmatprep.subr.bf16.mxu0 0
        %1937 = vmatpush1.bf16.msra.mxu0 0
        %1938 = vmatprep.subr.bf16.mxu0 0
        %1939 = vmatpush1.bf16.msra.mxu0 0
        %1940 = vmatprep.mubr.bf16.mxu0 0
        %1941 = vmatmul.mubr.bf16.gmra.mrb[0].mxu0 %v1903
        %v1942 = vpop.f32.mrb[0].mxu0
        %v1943 = vadd.f32 0.0, %v1942
        %v1944 = vpop.f32.mrb[0].mxu0
        %v1945 = vpop.f32.mrb[0].mxu0
        %v1946 = vpop.f32.mrb[0].mxu0
        %1947 = vdwg.mxu0
        %1948 = vrot.lane.b32.xlu0 %v1086, 104
        %v1949 = vpop.permute.xlu0 %1948
        %v1951 = vsel %vm1087, %v1899, 0
        %v1954 = vsel %vm1207, %v1949, 0
        %1956 = vmatprep.subr.bf16.mxu0 0
        %1957 = vmatpush1.bf16.msra.mxu0 %v1954
        %1958 = vmatprep.subr.bf16.mxu0 0
        %1959 = vmatpush1.bf16.msra.mxu0 0
        %1960 = vmatprep.subr.bf16.mxu0 0
        %1961 = vmatpush1.bf16.msra.mxu0 0
        %1962 = vmatprep.subr.bf16.mxu0 0
        %1963 = vmatpush1.bf16.msra.mxu0 0
        %1964 = vmatprep.subr.bf16.mxu0 0
        %1965 = vmatpush1.bf16.msra.mxu0 0
        %1966 = vmatprep.subr.bf16.mxu0 0
        %1967 = vmatpush1.bf16.msra.mxu0 0
        %1968 = vmatprep.subr.bf16.mxu0 0
        %1969 = vmatpush1.bf16.msra.mxu0 0
        %1970 = vmatprep.subr.bf16.mxu0 0
        %1971 = vmatpush1.bf16.msra.mxu0 0
        %1972 = vmatprep.subr.bf16.mxu0 0
        %1973 = vmatpush1.bf16.msra.mxu0 0
        %1974 = vmatprep.subr.bf16.mxu0 0
        %1975 = vmatpush1.bf16.msra.mxu0 0
        %1976 = vmatprep.subr.bf16.mxu0 0
        %1977 = vmatpush1.bf16.msra.mxu0 0
        %1978 = vmatprep.subr.bf16.mxu0 0
        %1979 = vmatpush1.bf16.msra.mxu0 0
        %1980 = vmatprep.subr.bf16.mxu0 0
        %1981 = vmatpush1.bf16.msra.mxu0 0
        %1982 = vmatprep.subr.bf16.mxu0 0
        %1983 = vmatpush1.bf16.msra.mxu0 0
        %1984 = vmatprep.subr.bf16.mxu0 0
        %1985 = vmatpush1.bf16.msra.mxu0 0
        %1986 = vmatprep.subr.bf16.mxu0 0
        %1987 = vmatpush1.bf16.msra.mxu0 0
        %1988 = vmatprep.mubr.bf16.mxu0 0
        %1989 = vmatmul.mubr.bf16.gmra.mrb[0].mxu0 %v1951
        %v1990 = vpop.f32.mrb[0].mxu0
        %v1991 = vadd.f32 0.0, %v1990
        %v1992 = vpop.f32.mrb[0].mxu0
        %v1993 = vpop.f32.mrb[0].mxu0
        %v1994 = vpop.f32.mrb[0].mxu0
        %1995 = vdwg.mxu0
        %v1996 = vpack.c.bf16 %v1943, %v1943
        %v1997 = vpack.c.bf16 %v1991, %v1991
        %v2000 = vunpack.c.l.b16 %v1996
        %v2001 = vunpack.c.l.b16 %v1997
        %v2002 = vpack.c.b16 %v2000, %v2000
        %v2003 = vpack.c.b16 %v2001, %v2001
        %2004 = vrot.lane.b32.xlu0 %v2002, 24
        %v2005 = vpop.permute.xlu0 %2004
        %2006 = vrot.lane.b32.xlu0 %v2003, 24
        %v2007 = vpop.permute.xlu0 %2006
        %vm2010 = vcmask 257216
        %2011 = vst.msk [vmem:[#allocation3] sm:$0xf] %vm2010, %v2005
        %2012 = vst.msk [vmem:[#allocation3 + $0x4] sm:$0xf] %vm2010, %v2007
        %v2013 = vld [vmem:[#allocation3] sm:$0xf]
        %v2014 = vld [vmem:[#allocation3 + $0x4] sm:$0xf]
        %v2015 = vld [vmem:[%s777] sm:$0xf]
        %v2016 = vld [vmem:[%s777 + $0x4] sm:$0xf]
        %v2017 = vld [vmem:[%s777 + $0x8] sm:$0xf]
        %v2018 = vld [vmem:[%s777 + $0xc] sm:$0xf]
        %v2021 = vunpack.c.l.b16 %v2013
        %v2022 = vunpack.c.l.b16 %v2014
        %v2023 = vpack.c.b16 %v2022, %v2021
        %v2028 = vunpack.c.l.b16 %v2015
        %v2029 = vunpack.c.l.b16 %v2016
        %v2030 = vunpack.c.l.b16 %v2017
        %v2031 = vunpack.c.l.b16 %v2018
        %v2032 = vpack.c.b16 %v2029, %v2028
        %v2033 = vpack.c.b16 %v2031, %v2030
        %v2037 = vsel %vm827, %v2023, 0
        %2039 = vmatprep.subr.bf16.mxu0 0
        %2040 = vmatpush1.bf16.msra.mxu0 %v2032
        %2041 = vmatprep.subr.bf16.mxu0 0
        %2042 = vmatpush1.bf16.msra.mxu0 %v2033
        %2043 = vmatprep.subr.bf16.mxu0 0
        %2044 = vmatpush1.bf16.msra.mxu0 0
        %2045 = vmatprep.subr.bf16.mxu0 0
        %2046 = vmatpush1.bf16.msra.mxu0 0
        %2047 = vmatprep.subr.bf16.mxu0 0
        %2048 = vmatpush1.bf16.msra.mxu0 0
        %2049 = vmatprep.subr.bf16.mxu0 0
        %2050 = vmatpush1.bf16.msra.mxu0 0
        %2051 = vmatprep.subr.bf16.mxu0 0
        %2052 = vmatpush1.bf16.msra.mxu0 0
        %2053 = vmatprep.subr.bf16.mxu0 0
        %2054 = vmatpush1.bf16.msra.mxu0 0
        %2055 = vmatprep.subr.bf16.mxu0 0
        %2056 = vmatpush1.bf16.msra.mxu0 0
        %2057 = vmatprep.subr.bf16.mxu0 0
        %2058 = vmatpush1.bf16.msra.mxu0 0
        %2059 = vmatprep.subr.bf16.mxu0 0
        %2060 = vmatpush1.bf16.msra.mxu0 0
        %2061 = vmatprep.subr.bf16.mxu0 0
        %2062 = vmatpush1.bf16.msra.mxu0 0
        %2063 = vmatprep.subr.bf16.mxu0 0
        %2064 = vmatpush1.bf16.msra.mxu0 0
        %2065 = vmatprep.subr.bf16.mxu0 0
        %2066 = vmatpush1.bf16.msra.mxu0 0
        %2067 = vmatprep.subr.bf16.mxu0 0
        %2068 = vmatpush1.bf16.msra.mxu0 0
        %2069 = vmatprep.subr.bf16.mxu0 0
        %2070 = vmatpush1.bf16.msra.mxu0 0
        %2071 = vmatprep.mubr.bf16.mxu0 0
        %2072 = vmatmul.mubr.bf16.gmra.mrb[0].mxu0 %v2037
        %v2073 = vpop.f32.mrb[0].mxu0
        %v2074 = vadd.f32 0.0, %v2073
        %v2075 = vpop.f32.mrb[0].mxu0
        %v2076 = vpop.f32.mrb[0].mxu0
        %v2077 = vadd.f32 0.0, %v2076
        %v2078 = vpop.f32.mrb[0].mxu0
        %2079 = vdwg.mxu0
        %v2080 = vadd.f32 %v823, %v2074
        %v2081 = vadd.f32 %v824, %v2077
        %v2082 = vld [vmem:[%s780] sm:$0x1]
        %v2084 = vlaneseq
        %v2085 = vshrl.u32 %v2084, 7
        %v2086 = vsub.s32 0, %v2085
        %v2087 = vrot.slane %v2082, %v2086
        %v2089 = vadd.f32 %v2080, %v2087
        %v2090 = vadd.f32 %v2081, %v2087
        %v2091 = vld [vmem:[%s783] sm:$0x1]
        %v2092 = vld [vmem:[%s786] sm:$0x1]
        %v2093 = vsel %vm827, %v2089, 0.0
        %2094 = vadd.xlane.f32.xlu0 %v2093
        %v2095 = vpop.xlane.xlu0 %2094
        %v2096 = vsel %vm827, %v2090, 0.0
        %2097 = vadd.xlane.f32.xlu0 %v2096
        %v2098 = vpop.xlane.xlu0 %2097
        %v2099 = vmul.f32 %v2095, %v834
        %v2100 = vmul.f32 %v2098, %v834
        %v2101 = vsub.f32 %v2089, %v2099
        %v2102 = vsub.f32 %v2090, %v2100
        %v2103 = vmul.f32 %v2101, %v2101
        %v2104 = vmul.f32 %v2102, %v2102
        %v2105 = vsel %vm827, %v2103, 0.0
        %2106 = vadd.xlane.f32.xlu0 %v2105
        %v2107 = vpop.xlane.xlu0 %2106
        %v2108 = vsel %vm827, %v2104, 0.0
        %2109 = vadd.xlane.f32.xlu0 %v2108
        %v2110 = vpop.xlane.xlu0 %2109
        %v2111 = vmul.f32 %v2107, %v834
        %v2112 = vmul.f32 %v2110, %v834
        %v2113 = vadd.f32 %v2111, 1e-05
        %v2114 = vadd.f32 %v2112, 1e-05
        %v2115 = vrsqrt.pop %v2113
        %v2116 = vrsqrt.pop %v2114
        %v2117 = vmul.f32 %v2101, %v2115
        %v2118 = vmul.f32 %v2102, %v2116
        %v2120 = vlaneseq
        %v2121 = vshrl.u32 %v2120, 7
        %v2122 = vsub.s32 0, %v2121
        %v2123 = vrot.slane %v2091, %v2122
        %v2125 = vmul.f32 %v2117, %v2123
        %v2126 = vmul.f32 %v2118, %v2123
        %v2128 = vlaneseq
        %v2129 = vshrl.u32 %v2128, 7
        %v2130 = vsub.s32 0, %v2129
        %v2131 = vrot.slane %v2092, %v2130
        %v2133 = vadd.f32 %v2125, %v2131
        %v2134 = vadd.f32 %v2126, %v2131
        %v2135 = vpack.c.bf16 %v2134, %v2133
        %v2136 = vld [vmem:[%s791] sm:$0xf]
        %v2137 = vld [vmem:[%s791 + $0x4] sm:$0xf]
        %v2138 = vld [vmem:[%s791 + $0x8] sm:$0xf]
        %v2139 = vld [vmem:[%s791 + $0xc] sm:$0xf]
        %v2140 = vld [vmem:[%s794] sm:$0x1]
        %v2142 = vlaneseq
        %v2143 = vshrl.u32 %v2142, 7
        %v2144 = vsub.s32 0, %v2143
        %v2145 = vrot.slane %v2140, %v2144
        %v2151 = vunpack.c.l.b16 %v2136
        %v2152 = vunpack.c.l.b16 %v2137
        %v2153 = vunpack.c.l.b16 %v2138
        %v2154 = vunpack.c.l.b16 %v2139
        %v2155 = vpack.c.b16 %v2152, %v2151
        %v2156 = vpack.c.b16 %v2154, %v2153
        %v2160 = vsel %vm827, %v2135, 0
        %2162 = vmatprep.subr.bf16.mxu0 0
        %2163 = vmatpush1.bf16.msra.mxu0 %v2155
        %2164 = vmatprep.subr.bf16.mxu0 0
        %2165 = vmatpush1.bf16.msra.mxu0 %v2156
        %2166 = vmatprep.subr.bf16.mxu0 0
        %2167 = vmatpush1.bf16.msra.mxu0 0
        %2168 = vmatprep.subr.bf16.mxu0 0
        %2169 = vmatpush1.bf16.msra.mxu0 0
        %2170 = vmatprep.subr.bf16.mxu0 0
        %2171 = vmatpush1.bf16.msra.mxu0 0
        %2172 = vmatprep.subr.bf16.mxu0 0
        %2173 = vmatpush1.bf16.msra.mxu0 0
        %2174 = vmatprep.subr.bf16.mxu0 0
        %2175 = vmatpush1.bf16.msra.mxu0 0
        %2176 = vmatprep.subr.bf16.mxu0 0
        %2177 = vmatpush1.bf16.msra.mxu0 0
        %2178 = vmatprep.subr.bf16.mxu0 0
        %2179 = vmatpush1.bf16.msra.mxu0 0
        %2180 = vmatprep.subr.bf16.mxu0 0
        %2181 = vmatpush1.bf16.msra.mxu0 0
        %2182 = vmatprep.subr.bf16.mxu0 0
        %2183 = vmatpush1.bf16.msra.mxu0 0
        %2184 = vmatprep.subr.bf16.mxu0 0
        %2185 = vmatpush1.bf16.msra.mxu0 0
        %2186 = vmatprep.subr.bf16.mxu0 0
        %2187 = vmatpush1.bf16.msra.mxu0 0
        %2188 = vmatprep.subr.bf16.mxu0 0
        %2189 = vmatpush1.bf16.msra.mxu0 0
        %2190 = vmatprep.subr.bf16.mxu0 0
        %2191 = vmatpush1.bf16.msra.mxu0 0
        %2192 = vmatprep.subr.bf16.mxu0 0
        %2193 = vmatpush1.bf16.msra.mxu0 0
        %2194 = vmatprep.mubr.bf16.mxu0 0
        %2195 = vmatmul.mubr.bf16.gmra.mrb[0].mxu0 %v2160
        %v2196 = vpop.f32.mrb[0].mxu0
        %v2197 = vadd.f32 %v2145, %v2196
        %v2198 = vpop.f32.mrb[0].mxu0
        %v2199 = vpop.f32.mrb[0].mxu0
        %v2200 = vadd.f32 %v2145, %v2199
        %v2201 = vpop.f32.mrb[0].mxu0
        %2202 = vdwg.mxu0
        %v2203 = vmul.f32 %v2197, 0.5
        %v2204 = vmul.f32 %v2200, 0.5
        %v2205 = vmul.f32 %v2197, 0.70710677
        %v2206 = vmul.f32 %v2200, 0.70710677
        %v2207 = verf.f32.pop %v2205
        %v2208 = verf.f32.pop %v2206
        %v2209 = vadd.f32 %v2207, 1.0
        %v2210 = vadd.f32 %v2208, 1.0
        %v2211 = vmul.f32 %v2203, %v2209
        %v2212 = vmul.f32 %v2204, %v2210
        %v2213 = vpack.c.bf16 %v2212, %v2211
        %v2214 = vld [vmem:[%s799] sm:$0xf]
        %v2215 = vld [vmem:[%s799 + $0x4] sm:$0xf]
        %v2216 = vld [vmem:[%s799 + $0x8] sm:$0xf]
        %v2217 = vld [vmem:[%s799 + $0xc] sm:$0xf]
        %v2218 = vld [vmem:[%s799 + $0x10] sm:$0xf]
        %v2219 = vld [vmem:[%s799 + $0x14] sm:$0xf]
        %v2220 = vld [vmem:[%s799 + $0x18] sm:$0xf]
        %v2221 = vld [vmem:[%s799 + $0x1c] sm:$0xf]
        %v2222 = vld [vmem:[%s799 + $0x20] sm:$0xf]
        %v2223 = vld [vmem:[%s799 + $0x24] sm:$0xf]
        %v2224 = vld [vmem:[%s799 + $0x28] sm:$0xf]
        %v2225 = vld [vmem:[%s799 + $0x2c] sm:$0xf]
        %v2226 = vld [vmem:[%s799 + $0x30] sm:$0xf]
        %v2227 = vld [vmem:[%s799 + $0x34] sm:$0xf]
        %v2228 = vld [vmem:[%s799 + $0x38] sm:$0xf]
        %v2229 = vld [vmem:[%s799 + $0x3c] sm:$0xf]
        %v2230 = vld [vmem:[%s802] sm:$0x1]
        %v2232 = vlaneseq
        %v2233 = vshrl.u32 %v2232, 7
        %v2234 = vsub.s32 0, %v2233
        %v2235 = vrot.slane %v2230, %v2234
        %v2253 = vunpack.c.l.b16 %v2214
        %v2254 = vunpack.c.l.b16 %v2215
        %v2255 = vunpack.c.l.b16 %v2216
        %v2256 = vunpack.c.l.b16 %v2217
        %v2257 = vunpack.c.l.b16 %v2218
        %v2258 = vunpack.c.l.b16 %v2219
        %v2259 = vunpack.c.l.b16 %v2220
        %v2260 = vunpack.c.l.b16 %v2221
        %v2261 = vunpack.c.l.b16 %v2222
        %v2262 = vunpack.c.l.b16 %v2223
        %v2263 = vunpack.c.l.b16 %v2224
        %v2264 = vunpack.c.l.b16 %v2225
        %v2265 = vunpack.c.l.b16 %v2226
        %v2266 = vunpack.c.l.b16 %v2227
        %v2267 = vunpack.c.l.b16 %v2228
        %v2268 = vunpack.c.l.b16 %v2229
        %v2269 = vpack.c.b16 %v2254, %v2253
        %v2270 = vpack.c.b16 %v2256, %v2255
        %v2271 = vpack.c.b16 %v2258, %v2257
        %v2272 = vpack.c.b16 %v2260, %v2259
        %v2273 = vpack.c.b16 %v2262, %v2261
        %v2274 = vpack.c.b16 %v2264, %v2263
        %v2275 = vpack.c.b16 %v2266, %v2265
        %v2276 = vpack.c.b16 %v2268, %v2267
        %2285 = vmatprep.subr.bf16.mxu0 0
        %2286 = vmatpush1.bf16.msra.mxu0 %v2269
        %2287 = vmatprep.subr.bf16.mxu0 0
        %2288 = vmatpush1.bf16.msra.mxu0 %v2270
        %2289 = vmatprep.subr.bf16.mxu0 0
        %2290 = vmatpush1.bf16.msra.mxu0 %v2271
        %2291 = vmatprep.subr.bf16.mxu0 0
        %2292 = vmatpush1.bf16.msra.mxu0 %v2272
        %2293 = vmatprep.subr.bf16.mxu0 0
        %2294 = vmatpush1.bf16.msra.mxu0 %v2273
        %2295 = vmatprep.subr.bf16.mxu0 0
        %2296 = vmatpush1.bf16.msra.mxu0 %v2274
        %2297 = vmatprep.subr.bf16.mxu0 0
        %2298 = vmatpush1.bf16.msra.mxu0 %v2275
        %2299 = vmatprep.subr.bf16.mxu0 0
        %2300 = vmatpush1.bf16.msra.mxu0 %v2276
        %2301 = vmatprep.subr.bf16.mxu0 0
        %2302 = vmatpush1.bf16.msra.mxu0 0
        %2303 = vmatprep.subr.bf16.mxu0 0
        %2304 = vmatpush1.bf16.msra.mxu0 0
        %2305 = vmatprep.subr.bf16.mxu0 0
        %2306 = vmatpush1.bf16.msra.mxu0 0
        %2307 = vmatprep.subr.bf16.mxu0 0
        %2308 = vmatpush1.bf16.msra.mxu0 0
        %2309 = vmatprep.subr.bf16.mxu0 0
        %2310 = vmatpush1.bf16.msra.mxu0 0
        %2311 = vmatprep.subr.bf16.mxu0 0
        %2312 = vmatpush1.bf16.msra.mxu0 0
        %2313 = vmatprep.subr.bf16.mxu0 0
        %2314 = vmatpush1.bf16.msra.mxu0 0
        %2315 = vmatprep.subr.bf16.mxu0 0
        %2316 = vmatpush1.bf16.msra.mxu0 0
        %2317 = vmatprep.mubr.bf16.mxu0 0
        %2318 = vmatmul.mubr.bf16.gmra.mrb[0].mxu0 %v2213
        %v2319 = vpop.f32.mrb[0].mxu0
        %v2320 = vadd.f32 %v2235, %v2319
        %v2321 = vpop.f32.mrb[0].mxu0
        %v2322 = vpop.f32.mrb[0].mxu0
        %v2323 = vadd.f32 %v2235, %v2322
        %v2324 = vpop.f32.mrb[0].mxu0
        %2325 = vdwg.mxu0
        %v2326 = vadd.f32 %v2089, %v2320
        %v2327 = vadd.f32 %v2090, %v2323
        %2328 = vst.msk [vmem:[#allocation2] sm:$0xff] %vm827, %v2326
        %2329 = vst.msk [vmem:[#allocation2 + $0x8] sm:$0xff] %vm827, %v2327
        %p2330 = scmp.eq.s32.totalorder %s31, 1
        // Predicated region
        $region102: #{tpu_custom_call.1} parent=91 // pred_check
          %p2331 = pneg %p2330
        $region103: #{tpu_custom_call.1} parent=91 // pred_check_branch
          %2333 = sbr.rel (%p2331) target = $region105
        $region104: #{tpu_custom_call.1} parent=91 // pred_region
          %v2334 = vld [vmem:[%s17] sm:$0x1]
          %v2335 = vld [vmem:[%s18] sm:$0x1]
          %v2336 = vsel %vm827, %v2326, 0.0
          %2337 = vadd.xlane.f32.xlu0 %v2336
          %v2338 = vpop.xlane.xlu0 %2337
          %v2339 = vsel %vm827, %v2327, 0.0
          %2340 = vadd.xlane.f32.xlu0 %v2339
          %v2341 = vpop.xlane.xlu0 %2340
          %v2342 = vmul.f32 %v2338, %v834
          %v2343 = vmul.f32 %v2341, %v834
          %v2344 = vsub.f32 %v2326, %v2342
          %v2345 = vsub.f32 %v2327, %v2343
          %v2346 = vmul.f32 %v2344, %v2344
          %v2347 = vmul.f32 %v2345, %v2345
          %v2348 = vsel %vm827, %v2346, 0.0
          %2349 = vadd.xlane.f32.xlu0 %v2348
          %v2350 = vpop.xlane.xlu0 %2349
          %v2351 = vsel %vm827, %v2347, 0.0
          %2352 = vadd.xlane.f32.xlu0 %v2351
          %v2353 = vpop.xlane.xlu0 %2352
          %v2354 = vmul.f32 %v2350, %v834
          %v2355 = vmul.f32 %v2353, %v834
          %v2356 = vadd.f32 %v2354, 1e-05
          %v2357 = vadd.f32 %v2355, 1e-05
          %v2358 = vrsqrt.pop %v2356
          %v2359 = vrsqrt.pop %v2357
          %v2360 = vmul.f32 %v2344, %v2358
          %v2361 = vmul.f32 %v2345, %v2359
          %v2363 = vlaneseq
          %v2364 = vshrl.u32 %v2363, 7
          %v2365 = vsub.s32 0, %v2364
          %v2366 = vrot.slane %v2334, %v2365
          %v2368 = vmul.f32 %v2360, %v2366
          %v2369 = vmul.f32 %v2361, %v2366
          %v2371 = vlaneseq
          %v2372 = vshrl.u32 %v2371, 7
          %v2373 = vsub.s32 0, %v2372
          %v2374 = vrot.slane %v2335, %v2373
          %v2376 = vadd.f32 %v2368, %v2374
          %v2377 = vadd.f32 %v2369, %v2374
          %2378 = vst.msk [vmem:[#allocation4] sm:$0xff] %vm827, %v2376
          %2379 = vst.msk [vmem:[#allocation4 + $0x8] sm:$0xff] %vm827, %v2377
        $region105: #{tpu_custom_call.1} parent=91 // pred_fallthru
          _
        // Predicated region
        $region106: #{tpu_custom_call.1} parent=91 // pred_check
          %p2380 = pneg %p502
        $region107: #{tpu_custom_call.1} parent=91 // pred_check_branch
          %2382 = sbr.rel (%p2380) target = $region109
        $region108: #{tpu_custom_call.1} parent=91 // pred_region
          %s2384 = ssub.s32 256, 256
          %2385 = vsyncadd [#allocation5], %s2384
          %s2386 = sshll.u32 [#allocation4], 4
          %s2387 = int_to_ptr.vmem [resolvable:$true] %s2386
          %2392 = dma.vmem_to_hbm [thread:$0]  %s2387, 256, %s19, [#allocation5], 128, 128, 8
        $region109: #{tpu_custom_call.1} parent=91 // pred_fallthru
          _
        // Predicated region
        $region110: #{tpu_custom_call.1} parent=91 // pred_check
          %p2393 = pneg %p502
        $region111: #{tpu_custom_call.1} parent=91 // pred_check_branch
          %2395 = sbr.rel (%p2393) target = $region113
        $region112: #{tpu_custom_call.1} parent=91 // pred_region
          %2396 = dma.done [#allocation5], 256
        $region113: #{tpu_custom_call.1} parent=91 // pred_fallthru
          _
      $region92: #{tpu_custom_call.1} parent=5 // pred_fallthru
        _
      %p2397 = scmp.le.s32.totalorder 2, %s26
      // Predicated region
      $region114: #{tpu_custom_call.1} parent=5 // pred_check
        %p2398 = pneg %p2397
      $region115: #{tpu_custom_call.1} parent=5 // pred_check_branch
        %2400 = sbr.rel (%p2398) target = $region117
      $region116: #{tpu_custom_call.1} parent=5 // pred_region
        %s2401 = ssub.s32 %s26, 2
      $region117: #{tpu_custom_call.1} parent=5 // pred_fallthru
        _
    $region6: #{tpu_custom_call.1} parent=1 // loop_footer
      %s30 = sadd.s32 1, %s26
    $region7: #{tpu_custom_call.1} parent=1 // loop_footer_branch
      %25 = sbr.rel target = $region3
    $region8: #{tpu_custom_call.1} parent=1 // loop_exit
      _
    %2402 = vsyncpa [#allocation5], 1
    %s2403 = scalar_lea.sflag [#allocation5], 1
    %2404 = vsyncpa %s2403, 1

</llo_original>
